<compile_context>
chip_gen: v6e
topology: v6e:2x2x1
jax: 0.10.0
libtpu: 0.0.40
codegen_flags: <defaults>
</compile_context>

<pallas_src>
import functools

import jax
import jax.numpy as jnp
from jax.experimental import pallas as pl
from jax.experimental.pallas import tpu as pltpu  # noqa: F401  (TPU backend)

_LANE = 128
_SUBLANE = 8


def _decoder_kernel(x_ref, wih_ref, whh_ref, b_ref, wlin_ref, blin_ref,
                    logits_ref, msg_ref, *, T, Bp, Hp, S):
    bf16 = jnp.bfloat16

    # Hoisted, time-invariant input projection (+ fused LSTM biases), f32 accum.
    x_proj = (jnp.dot(x_ref[...].astype(bf16), wih_ref[...],
                      preferred_element_type=jnp.float32)
              + b_ref[...])                                             # (Bp, 4Hp)
    blin = blin_ref[...]                                                # (1, S)

    h = jnp.zeros((Bp, Hp), jnp.float32)
    c = jnp.zeros((Bp, Hp), jnp.float32)
    hs = []

    # T is a small static constant: full unroll, h/c carried as values.  Only
    # the gate matmul + activations + c/h update live on the serial chain now.
    for _ in range(T):
        gates = x_proj + jnp.dot(h.astype(bf16), whh_ref[...],
                                 preferred_element_type=jnp.float32)    # (Bp, 4Hp)
        # Lane-aligned gate split: each gate occupies a full 128-lane block.
        i_g = jax.nn.sigmoid(gates[:, 0 * Hp:1 * Hp])
        f_g = jax.nn.sigmoid(gates[:, 1 * Hp:2 * Hp])
        g_g = jnp.tanh(gates[:, 2 * Hp:3 * Hp])
        o_g = jax.nn.sigmoid(gates[:, 3 * Hp:4 * Hp])
        c = f_g * c + i_g * g_g
        h = o_g * jnp.tanh(c)
        hs.append(h)

    # ---- everything below is off the recurrence's critical path ----
    h_all = jnp.concatenate(hs, axis=0)                                 # (T*Bp, Hp)

    # One batched head matmul (M = T*Bp rows) instead of T tiny ones.
    logits = (jnp.dot(h_all.astype(bf16), wlin_ref[...],
                      preferred_element_type=jnp.float32) + blin)       # (T*Bp, S)
    logits_ref[...] = logits

    # one-hot(argmax), first-index tie-break (matches torch/jnp argmax),
    # one batched reduction pass + one whole-block store.
    col = jax.lax.broadcasted_iota(jnp.int32, (T * Bp, S), 1)
    mx = jnp.max(logits, axis=-1, keepdims=True)
    idx = jnp.min(jnp.where(logits == mx, col, S), axis=-1, keepdims=True)
    msg_ref[...] = (col == idx).astype(jnp.float32)


def decoder_forward(x, params, max_len_msg):
    """x: (B, E) float32.  Returns (logits, msg), both (T, B, num_symbols)."""
    B, E = x.shape
    w_ih, w_hh, b_ih, b_hh, w_lin, b_lin = (params[k] for k in
                                            ("w_ih", "w_hh", "b_ih", "b_hh",
                                             "w_lin", "b_lin"))
    H = w_ih.shape[0] // 4
    S = w_lin.shape[0]
    T = max_len_msg
    Hp = ((H + _LANE - 1) // _LANE) * _LANE        # pad each gate to full lanes
    Bp = ((B + _SUBLANE - 1) // _SUBLANE) * _SUBLANE   # pad batch to sublanes
    f32, bf16 = jnp.float32, jnp.bfloat16

    # --- weight prep (glue): transpose, fuse biases, pad gates, cast bf16 ---
    def pad_gate_cols(w_t):                        # (in, 4H) -> (in, 4Hp), zeros
        out = jnp.zeros((w_t.shape[0], 4 * Hp), f32)
        for g in range(4):
            out = out.at[:, g * Hp:g * Hp + H].set(w_t[:, g * H:(g + 1) * H])
        return out

    wih_p = pad_gate_cols(jnp.asarray(w_ih.T, f32)).astype(bf16)          # (E, 4Hp)
    whh_p = jnp.zeros((Hp, 4 * Hp), f32).at[:H].set(
        pad_gate_cols(jnp.asarray(w_hh.T, f32))).astype(bf16)             # (Hp, 4Hp)
    b_p = pad_gate_cols(jnp.asarray((b_ih + b_hh)[None, :], f32))         # (1, 4Hp) f32
    wlin_p = jnp.zeros((Hp, S), f32).at[:H].set(
        jnp.asarray(w_lin.T, f32)).astype(bf16)                           # (Hp, S)
    blin = jnp.asarray(b_lin[None, :], f32)                               # (1, S)

    x_p = jnp.zeros((Bp, E), f32).at[:B].set(jnp.asarray(x, f32))         # (Bp, E)

    flops = (2 * Bp * E * 4 * Hp                   # hoisted input projection
             + T * 2 * Bp * Hp * 4 * Hp            # recurrent matmuls
             + 2 * (T * Bp) * Hp * S)              # single batched head matmul
    transcendentals = T * Bp * Hp * 5              # 3 sigmoid + 2 tanh per step
    bytes_accessed = (4 * (Bp * E + 4 * Hp + S + 2 * T * Bp * S)          # f32
                      + 2 * (E * 4 * Hp + Hp * 4 * Hp + Hp * S))          # bf16 weights

    kernel = functools.partial(_decoder_kernel, T=T, Bp=Bp, Hp=Hp, S=S)

    logits_flat, msg_flat = pl.pallas_call(
        kernel,
        out_shape=(jax.ShapeDtypeStruct((T * Bp, S), f32),
                   jax.ShapeDtypeStruct((T * Bp, S), f32)),
        cost_estimate=pl.CostEstimate(flops=flops,
                                      transcendentals=transcendentals,
                                      bytes_accessed=bytes_accessed),
    )(x_p, wih_p, whh_p, b_p, wlin_p, blin)

    logits = logits_flat.reshape(T, Bp, S)[:, :B]
    msg = msg_flat.reshape(T, Bp, S)[:, :B]
    return logits, msg


def _reference(x, params, max_len_msg):
    """Pure-JAX reference of the same forward pass (eval path)."""
    w_ih, w_hh, b_ih, b_hh, w_lin, b_lin = (params[k] for k in
                                            ("w_ih", "w_hh", "b_ih", "b_hh",
                                             "w_lin", "b_lin"))
    H = w_hh.shape[1]

    def step(carry, _):
        h, c = carry
        gates = x @ w_ih.T + h @ w_hh.T + b_ih + b_hh
        i = jax.nn.sigmoid(gates[:, 0:H])
        f = jax.nn.sigmoid(gates[:, H:2 * H])
        g = jnp.tanh(gates[:, 2 * H:3 * H])
        o = jax.nn.sigmoid(gates[:, 3 * H:4 * H])
        c = f * c + i * g
        h = o * jnp.tanh(c)
        return (h, c), h

    B = x.shape[0]
    h0 = jnp.zeros((B, H), jnp.float32)
    (_, _), hs = jax.lax.scan(step, (h0, h0), None, length=max_len_msg)
    logits = hs @ w_lin.T + b_lin                          # (T, B, S)
    msg = jax.nn.one_hot(jnp.argmax(logits, -1), logits.shape[-1],
                         dtype=jnp.float32)
    return logits, msg


if __name__ == "__main__":
    embedding_size = 16
    dec_dim = 32
    max_len_msg = 8
    num_symbols = 8
    batch = 4

    key = jax.random.PRNGKey(0)
    ks = jax.random.split(key, 7)
    params = {
        "w_ih": 0.1 * jax.random.normal(ks[0], (4 * dec_dim, embedding_size), jnp.float32),
        "w_hh": 0.1 * jax.random.normal(ks[1], (4 * dec_dim, dec_dim), jnp.float32),
        "b_ih": 0.1 * jax.random.normal(ks[2], (4 * dec_dim,), jnp.float32),
        "b_hh": 0.1 * jax.random.normal(ks[3], (4 * dec_dim,), jnp.float32),
        "w_lin": 0.1 * jax.random.normal(ks[4], (num_symbols, dec_dim), jnp.float32),
        "b_lin": 0.1 * jax.random.normal(ks[5], (num_symbols,), jnp.float32),
    }
    x = jax.random.normal(ks[6], (batch, embedding_size), jnp.float32)

    logits, msg = decoder_forward(x, params, max_len_msg)
    jax.block_until_ready((logits, msg))

    ref_logits, ref_msg = _reference(x, params, max_len_msg)
    assert logits.shape == (max_len_msg, batch, num_symbols)
    assert msg.shape == (max_len_msg, batch, num_symbols)
    # bf16-stored weights (MXU-native; default precision already rounded there)
    assert jnp.allclose(logits, ref_logits, atol=2e-3, rtol=2e-3)
    assert jnp.allclose(msg, ref_msg)

    print("KERNEL_OK")
</pallas_src>

<mosaic_0001>
module attributes {stable_mosaic.version = 11 : i64} {
  func.func @_decoder_kernel(%arg0: memref<8x16xf32, #tpu.memory_space<vmem>>, %arg1: memref<16x512xbf16, #tpu.memory_space<vmem>>, %arg2: memref<128x512xbf16, #tpu.memory_space<vmem>>, %arg3: memref<1x512xf32, #tpu.memory_space<vmem>>, %arg4: memref<128x8xbf16, #tpu.memory_space<vmem>>, %arg5: memref<1x8xf32, #tpu.memory_space<vmem>>, %arg6: memref<64x8xf32, #tpu.memory_space<vmem>>, %arg7: memref<64x8xf32, #tpu.memory_space<vmem>>) attributes {dimension_semantics = [], scalar_prefetch = 0 : i64, scratch_operands = 0 : i64, tpu.core_type = #tpu.core_type<tc>} {
    %c0 = arith.constant 0 : index
    %c0_0 = arith.constant 0 : index
    %0 = vector.load %arg0[%c0, %c0_0] : memref<8x16xf32, #tpu.memory_space<vmem>>, vector<8x16xf32>
    %1 = arith.truncf %0 : vector<8x16xf32> to vector<8x16xbf16>
    %c0_1 = arith.constant 0 : index
    %c0_2 = arith.constant 0 : index
    %2 = vector.load %arg1[%c0_1, %c0_2] : memref<16x512xbf16, #tpu.memory_space<vmem>>, vector<16x512xbf16>
    %cst = arith.constant dense<0.000000e+00> : vector<8x512xf32>
    %3 = tpu.matmul %1, %2, %cst {dimension_numbers = #tpu.dot_dimension_numbers<[1], [0], [0], [1], [0, 0, 1, 1], [], []>} : vector<8x16xbf16>, vector<16x512xbf16>, vector<8x512xf32> -> vector<8x512xf32>
    %c0_3 = arith.constant 0 : index
    %c0_4 = arith.constant 0 : index
    %4 = vector.load %arg3[%c0_3, %c0_4] : memref<1x512xf32, #tpu.memory_space<vmem>>, vector<1x512xf32>
    %5 = vector.broadcast %4 : vector<1x512xf32> to vector<8x512xf32>
    %6 = arith.addf %3, %5 : vector<8x512xf32>
    %c0_5 = arith.constant 0 : index
    %c0_6 = arith.constant 0 : index
    %7 = vector.load %arg5[%c0_5, %c0_6] : memref<1x8xf32, #tpu.memory_space<vmem>>, vector<1x8xf32>
    %cst_7 = arith.constant 0.000000e+00 : f32
    %8 = vector.broadcast %cst_7 : f32 to vector<8x128xf32>
    %cst_8 = arith.constant 0.000000e+00 : f32
    %9 = vector.broadcast %cst_8 : f32 to vector<8x128xf32>
    %10 = arith.truncf %8 : vector<8x128xf32> to vector<8x128xbf16>
    %c0_9 = arith.constant 0 : index
    %c0_10 = arith.constant 0 : index
    %11 = vector.load %arg2[%c0_9, %c0_10] : memref<128x512xbf16, #tpu.memory_space<vmem>>, vector<128x512xbf16>
    %cst_11 = arith.constant dense<0.000000e+00> : vector<8x512xf32>
    %12 = tpu.matmul %10, %11, %cst_11 {dimension_numbers = #tpu.dot_dimension_numbers<[1], [0], [0], [1], [0, 0, 1, 1], [], []>} : vector<8x128xbf16>, vector<128x512xbf16>, vector<8x512xf32> -> vector<8x512xf32>
    %13 = arith.addf %6, %12 : vector<8x512xf32>
    %14 = vector.extract_strided_slice %13 {offsets = [0, 0], sizes = [8, 128], strides = [1, 1]} : vector<8x512xf32> to vector<8x128xf32>
    %15 = arith.negf %14 : vector<8x128xf32>
    %16 = math.exp %15 : vector<8x128xf32>
    %cst_12 = arith.constant 1.000000e+00 : f32
    %17 = vector.broadcast %cst_12 : f32 to vector<8x128xf32>
    %18 = arith.addf %17, %16 : vector<8x128xf32>
    %19 = arith.divf %17, %18 : vector<8x128xf32>
    %20 = vector.extract_strided_slice %13 {offsets = [0, 128], sizes = [8, 128], strides = [1, 1]} : vector<8x512xf32> to vector<8x128xf32>
    %21 = arith.negf %20 : vector<8x128xf32>
    %22 = math.exp %21 : vector<8x128xf32>
    %cst_13 = arith.constant 1.000000e+00 : f32
    %23 = vector.broadcast %cst_13 : f32 to vector<8x128xf32>
    %24 = arith.addf %23, %22 : vector<8x128xf32>
    %25 = arith.divf %23, %24 : vector<8x128xf32>
    %26 = vector.extract_strided_slice %13 {offsets = [0, 256], sizes = [8, 128], strides = [1, 1]} : vector<8x512xf32> to vector<8x128xf32>
    %27 = math.tanh %26 : vector<8x128xf32>
    %28 = vector.extract_strided_slice %13 {offsets = [0, 384], sizes = [8, 128], strides = [1, 1]} : vector<8x512xf32> to vector<8x128xf32>
    %29 = arith.negf %28 : vector<8x128xf32>
    %30 = math.exp %29 : vector<8x128xf32>
    %cst_14 = arith.constant 1.000000e+00 : f32
    %31 = vector.broadcast %cst_14 : f32 to vector<8x128xf32>
    %32 = arith.addf %31, %30 : vector<8x128xf32>
    %33 = arith.divf %31, %32 : vector<8x128xf32>
    %34 = arith.mulf %25, %9 : vector<8x128xf32>
    %35 = arith.mulf %19, %27 : vector<8x128xf32>
    %36 = arith.addf %34, %35 : vector<8x128xf32>
    %37 = math.tanh %36 : vector<8x128xf32>
    %38 = arith.mulf %33, %37 : vector<8x128xf32>
    %39 = arith.truncf %38 : vector<8x128xf32> to vector<8x128xbf16>
    %c0_15 = arith.constant 0 : index
    %c0_16 = arith.constant 0 : index
    %40 = vector.load %arg2[%c0_15, %c0_16] : memref<128x512xbf16, #tpu.memory_space<vmem>>, vector<128x512xbf16>
    %cst_17 = arith.constant dense<0.000000e+00> : vector<8x512xf32>
    %41 = tpu.matmul %39, %40, %cst_17 {dimension_numbers = #tpu.dot_dimension_numbers<[1], [0], [0], [1], [0, 0, 1, 1], [], []>} : vector<8x128xbf16>, vector<128x512xbf16>, vector<8x512xf32> -> vector<8x512xf32>
    %42 = arith.addf %6, %41 : vector<8x512xf32>
    %43 = vector.extract_strided_slice %42 {offsets = [0, 0], sizes = [8, 128], strides = [1, 1]} : vector<8x512xf32> to vector<8x128xf32>
    %44 = arith.negf %43 : vector<8x128xf32>
    %45 = math.exp %44 : vector<8x128xf32>
    %cst_18 = arith.constant 1.000000e+00 : f32
    %46 = vector.broadcast %cst_18 : f32 to vector<8x128xf32>
    %47 = arith.addf %46, %45 : vector<8x128xf32>
    %48 = arith.divf %46, %47 : vector<8x128xf32>
    %49 = vector.extract_strided_slice %42 {offsets = [0, 128], sizes = [8, 128], strides = [1, 1]} : vector<8x512xf32> to vector<8x128xf32>
    %50 = arith.negf %49 : vector<8x128xf32>
    %51 = math.exp %50 : vector<8x128xf32>
    %cst_19 = arith.constant 1.000000e+00 : f32
    %52 = vector.broadcast %cst_19 : f32 to vector<8x128xf32>
    %53 = arith.addf %52, %51 : vector<8x128xf32>
    %54 = arith.divf %52, %53 : vector<8x128xf32>
    %55 = vector.extract_strided_slice %42 {offsets = [0, 256], sizes = [8, 128], strides = [1, 1]} : vector<8x512xf32> to vector<8x128xf32>
    %56 = math.tanh %55 : vector<8x128xf32>
    %57 = vector.extract_strided_slice %42 {offsets = [0, 384], sizes = [8, 128], strides = [1, 1]} : vector<8x512xf32> to vector<8x128xf32>
    %58 = arith.negf %57 : vector<8x128xf32>
    %59 = math.exp %58 : vector<8x128xf32>
    %cst_20 = arith.constant 1.000000e+00 : f32
    %60 = vector.broadcast %cst_20 : f32 to vector<8x128xf32>
    %61 = arith.addf %60, %59 : vector<8x128xf32>
    %62 = arith.divf %60, %61 : vector<8x128xf32>
    %63 = arith.mulf %54, %36 : vector<8x128xf32>
    %64 = arith.mulf %48, %56 : vector<8x128xf32>
    %65 = arith.addf %63, %64 : vector<8x128xf32>
    %66 = math.tanh %65 : vector<8x128xf32>
    %67 = arith.mulf %62, %66 : vector<8x128xf32>
    %68 = arith.truncf %67 : vector<8x128xf32> to vector<8x128xbf16>
    %c0_21 = arith.constant 0 : index
    %c0_22 = arith.constant 0 : index
    %69 = vector.load %arg2[%c0_21, %c0_22] : memref<128x512xbf16, #tpu.memory_space<vmem>>, vector<128x512xbf16>
    %cst_23 = arith.constant dense<0.000000e+00> : vector<8x512xf32>
    %70 = tpu.matmul %68, %69, %cst_23 {dimension_numbers = #tpu.dot_dimension_numbers<[1], [0], [0], [1], [0, 0, 1, 1], [], []>} : vector<8x128xbf16>, vector<128x512xbf16>, vector<8x512xf32> -> vector<8x512xf32>
    %71 = arith.addf %6, %70 : vector<8x512xf32>
    %72 = vector.extract_strided_slice %71 {offsets = [0, 0], sizes = [8, 128], strides = [1, 1]} : vector<8x512xf32> to vector<8x128xf32>
    %73 = arith.negf %72 : vector<8x128xf32>
    %74 = math.exp %73 : vector<8x128xf32>
    %cst_24 = arith.constant 1.000000e+00 : f32
    %75 = vector.broadcast %cst_24 : f32 to vector<8x128xf32>
    %76 = arith.addf %75, %74 : vector<8x128xf32>
    %77 = arith.divf %75, %76 : vector<8x128xf32>
    %78 = vector.extract_strided_slice %71 {offsets = [0, 128], sizes = [8, 128], strides = [1, 1]} : vector<8x512xf32> to vector<8x128xf32>
    %79 = arith.negf %78 : vector<8x128xf32>
    %80 = math.exp %79 : vector<8x128xf32>
    %cst_25 = arith.constant 1.000000e+00 : f32
    %81 = vector.broadcast %cst_25 : f32 to vector<8x128xf32>
    %82 = arith.addf %81, %80 : vector<8x128xf32>
    %83 = arith.divf %81, %82 : vector<8x128xf32>
    %84 = vector.extract_strided_slice %71 {offsets = [0, 256], sizes = [8, 128], strides = [1, 1]} : vector<8x512xf32> to vector<8x128xf32>
    %85 = math.tanh %84 : vector<8x128xf32>
    %86 = vector.extract_strided_slice %71 {offsets = [0, 384], sizes = [8, 128], strides = [1, 1]} : vector<8x512xf32> to vector<8x128xf32>
    %87 = arith.negf %86 : vector<8x128xf32>
    %88 = math.exp %87 : vector<8x128xf32>
    %cst_26 = arith.constant 1.000000e+00 : f32
    %89 = vector.broadcast %cst_26 : f32 to vector<8x128xf32>
    %90 = arith.addf %89, %88 : vector<8x128xf32>
    %91 = arith.divf %89, %90 : vector<8x128xf32>
    %92 = arith.mulf %83, %65 : vector<8x128xf32>
    %93 = arith.mulf %77, %85 : vector<8x128xf32>
    %94 = arith.addf %92, %93 : vector<8x128xf32>
    %95 = math.tanh %94 : vector<8x128xf32>
    %96 = arith.mulf %91, %95 : vector<8x128xf32>
    %97 = arith.truncf %96 : vector<8x128xf32> to vector<8x128xbf16>
    %c0_27 = arith.constant 0 : index
    %c0_28 = arith.constant 0 : index
    %98 = vector.load %arg2[%c0_27, %c0_28] : memref<128x512xbf16, #tpu.memory_space<vmem>>, vector<128x512xbf16>
    %cst_29 = arith.constant dense<0.000000e+00> : vector<8x512xf32>
    %99 = tpu.matmul %97, %98, %cst_29 {dimension_numbers = #tpu.dot_dimension_numbers<[1], [0], [0], [1], [0, 0, 1, 1], [], []>} : vector<8x128xbf16>, vector<128x512xbf16>, vector<8x512xf32> -> vector<8x512xf32>
    %100 = arith.addf %6, %99 : vector<8x512xf32>
    %101 = vector.extract_strided_slice %100 {offsets = [0, 0], sizes = [8, 128], strides = [1, 1]} : vector<8x512xf32> to vector<8x128xf32>
    %102 = arith.negf %101 : vector<8x128xf32>
    %103 = math.exp %102 : vector<8x128xf32>
    %cst_30 = arith.constant 1.000000e+00 : f32
    %104 = vector.broadcast %cst_30 : f32 to vector<8x128xf32>
    %105 = arith.addf %104, %103 : vector<8x128xf32>
    %106 = arith.divf %104, %105 : vector<8x128xf32>
    %107 = vector.extract_strided_slice %100 {offsets = [0, 128], sizes = [8, 128], strides = [1, 1]} : vector<8x512xf32> to vector<8x128xf32>
    %108 = arith.negf %107 : vector<8x128xf32>
    %109 = math.exp %108 : vector<8x128xf32>
    %cst_31 = arith.constant 1.000000e+00 : f32
    %110 = vector.broadcast %cst_31 : f32 to vector<8x128xf32>
    %111 = arith.addf %110, %109 : vector<8x128xf32>
    %112 = arith.divf %110, %111 : vector<8x128xf32>
    %113 = vector.extract_strided_slice %100 {offsets = [0, 256], sizes = [8, 128], strides = [1, 1]} : vector<8x512xf32> to vector<8x128xf32>
    %114 = math.tanh %113 : vector<8x128xf32>
    %115 = vector.extract_strided_slice %100 {offsets = [0, 384], sizes = [8, 128], strides = [1, 1]} : vector<8x512xf32> to vector<8x128xf32>
    %116 = arith.negf %115 : vector<8x128xf32>
    %117 = math.exp %116 : vector<8x128xf32>
    %cst_32 = arith.constant 1.000000e+00 : f32
    %118 = vector.broadcast %cst_32 : f32 to vector<8x128xf32>
    %119 = arith.addf %118, %117 : vector<8x128xf32>
    %120 = arith.divf %118, %119 : vector<8x128xf32>
    %121 = arith.mulf %112, %94 : vector<8x128xf32>
    %122 = arith.mulf %106, %114 : vector<8x128xf32>
    %123 = arith.addf %121, %122 : vector<8x128xf32>
    %124 = math.tanh %123 : vector<8x128xf32>
    %125 = arith.mulf %120, %124 : vector<8x128xf32>
    %126 = arith.truncf %125 : vector<8x128xf32> to vector<8x128xbf16>
    %c0_33 = arith.constant 0 : index
    %c0_34 = arith.constant 0 : index
    %127 = vector.load %arg2[%c0_33, %c0_34] : memref<128x512xbf16, #tpu.memory_space<vmem>>, vector<128x512xbf16>
    %cst_35 = arith.constant dense<0.000000e+00> : vector<8x512xf32>
    %128 = tpu.matmul %126, %127, %cst_35 {dimension_numbers = #tpu.dot_dimension_numbers<[1], [0], [0], [1], [0, 0, 1, 1], [], []>} : vector<8x128xbf16>, vector<128x512xbf16>, vector<8x512xf32> -> vector<8x512xf32>
    %129 = arith.addf %6, %128 : vector<8x512xf32>
    %130 = vector.extract_strided_slice %129 {offsets = [0, 0], sizes = [8, 128], strides = [1, 1]} : vector<8x512xf32> to vector<8x128xf32>
    %131 = arith.negf %130 : vector<8x128xf32>
    %132 = math.exp %131 : vector<8x128xf32>
    %cst_36 = arith.constant 1.000000e+00 : f32
    %133 = vector.broadcast %cst_36 : f32 to vector<8x128xf32>
    %134 = arith.addf %133, %132 : vector<8x128xf32>
    %135 = arith.divf %133, %134 : vector<8x128xf32>
    %136 = vector.extract_strided_slice %129 {offsets = [0, 128], sizes = [8, 128], strides = [1, 1]} : vector<8x512xf32> to vector<8x128xf32>
    %137 = arith.negf %136 : vector<8x128xf32>
    %138 = math.exp %137 : vector<8x128xf32>
    %cst_37 = arith.constant 1.000000e+00 : f32
    %139 = vector.broadcast %cst_37 : f32 to vector<8x128xf32>
    %140 = arith.addf %139, %138 : vector<8x128xf32>
    %141 = arith.divf %139, %140 : vector<8x128xf32>
    %142 = vector.extract_strided_slice %129 {offsets = [0, 256], sizes = [8, 128], strides = [1, 1]} : vector<8x512xf32> to vector<8x128xf32>
    %143 = math.tanh %142 : vector<8x128xf32>
    %144 = vector.extract_strided_slice %129 {offsets = [0, 384], sizes = [8, 128], strides = [1, 1]} : vector<8x512xf32> to vector<8x128xf32>
    %145 = arith.negf %144 : vector<8x128xf32>
    %146 = math.exp %145 : vector<8x128xf32>
    %cst_38 = arith.constant 1.000000e+00 : f32
    %147 = vector.broadcast %cst_38 : f32 to vector<8x128xf32>
    %148 = arith.addf %147, %146 : vector<8x128xf32>
    %149 = arith.divf %147, %148 : vector<8x128xf32>
    %150 = arith.mulf %141, %123 : vector<8x128xf32>
    %151 = arith.mulf %135, %143 : vector<8x128xf32>
    %152 = arith.addf %150, %151 : vector<8x128xf32>
    %153 = math.tanh %152 : vector<8x128xf32>
    %154 = arith.mulf %149, %153 : vector<8x128xf32>
    %155 = arith.truncf %154 : vector<8x128xf32> to vector<8x128xbf16>
    %c0_39 = arith.constant 0 : index
    %c0_40 = arith.constant 0 : index
    %156 = vector.load %arg2[%c0_39, %c0_40] : memref<128x512xbf16, #tpu.memory_space<vmem>>, vector<128x512xbf16>
    %cst_41 = arith.constant dense<0.000000e+00> : vector<8x512xf32>
    %157 = tpu.matmul %155, %156, %cst_41 {dimension_numbers = #tpu.dot_dimension_numbers<[1], [0], [0], [1], [0, 0, 1, 1], [], []>} : vector<8x128xbf16>, vector<128x512xbf16>, vector<8x512xf32> -> vector<8x512xf32>
    %158 = arith.addf %6, %157 : vector<8x512xf32>
    %159 = vector.extract_strided_slice %158 {offsets = [0, 0], sizes = [8, 128], strides = [1, 1]} : vector<8x512xf32> to vector<8x128xf32>
    %160 = arith.negf %159 : vector<8x128xf32>
    %161 = math.exp %160 : vector<8x128xf32>
    %cst_42 = arith.constant 1.000000e+00 : f32
    %162 = vector.broadcast %cst_42 : f32 to vector<8x128xf32>
    %163 = arith.addf %162, %161 : vector<8x128xf32>
    %164 = arith.divf %162, %163 : vector<8x128xf32>
    %165 = vector.extract_strided_slice %158 {offsets = [0, 128], sizes = [8, 128], strides = [1, 1]} : vector<8x512xf32> to vector<8x128xf32>
    %166 = arith.negf %165 : vector<8x128xf32>
    %167 = math.exp %166 : vector<8x128xf32>
    %cst_43 = arith.constant 1.000000e+00 : f32
    %168 = vector.broadcast %cst_43 : f32 to vector<8x128xf32>
    %169 = arith.addf %168, %167 : vector<8x128xf32>
    %170 = arith.divf %168, %169 : vector<8x128xf32>
    %171 = vector.extract_strided_slice %158 {offsets = [0, 256], sizes = [8, 128], strides = [1, 1]} : vector<8x512xf32> to vector<8x128xf32>
    %172 = math.tanh %171 : vector<8x128xf32>
    %173 = vector.extract_strided_slice %158 {offsets = [0, 384], sizes = [8, 128], strides = [1, 1]} : vector<8x512xf32> to vector<8x128xf32>
    %174 = arith.negf %173 : vector<8x128xf32>
    %175 = math.exp %174 : vector<8x128xf32>
    %cst_44 = arith.constant 1.000000e+00 : f32
    %176 = vector.broadcast %cst_44 : f32 to vector<8x128xf32>
    %177 = arith.addf %176, %175 : vector<8x128xf32>
    %178 = arith.divf %176, %177 : vector<8x128xf32>
    %179 = arith.mulf %170, %152 : vector<8x128xf32>
    %180 = arith.mulf %164, %172 : vector<8x128xf32>
    %181 = arith.addf %179, %180 : vector<8x128xf32>
    %182 = math.tanh %181 : vector<8x128xf32>
    %183 = arith.mulf %178, %182 : vector<8x128xf32>
    %184 = arith.truncf %183 : vector<8x128xf32> to vector<8x128xbf16>
    %c0_45 = arith.constant 0 : index
    %c0_46 = arith.constant 0 : index
    %185 = vector.load %arg2[%c0_45, %c0_46] : memref<128x512xbf16, #tpu.memory_space<vmem>>, vector<128x512xbf16>
    %cst_47 = arith.constant dense<0.000000e+00> : vector<8x512xf32>
    %186 = tpu.matmul %184, %185, %cst_47 {dimension_numbers = #tpu.dot_dimension_numbers<[1], [0], [0], [1], [0, 0, 1, 1], [], []>} : vector<8x128xbf16>, vector<128x512xbf16>, vector<8x512xf32> -> vector<8x512xf32>
    %187 = arith.addf %6, %186 : vector<8x512xf32>
    %188 = vector.extract_strided_slice %187 {offsets = [0, 0], sizes = [8, 128], strides = [1, 1]} : vector<8x512xf32> to vector<8x128xf32>
    %189 = arith.negf %188 : vector<8x128xf32>
    %190 = math.exp %189 : vector<8x128xf32>
    %cst_48 = arith.constant 1.000000e+00 : f32
    %191 = vector.broadcast %cst_48 : f32 to vector<8x128xf32>
    %192 = arith.addf %191, %190 : vector<8x128xf32>
    %193 = arith.divf %191, %192 : vector<8x128xf32>
    %194 = vector.extract_strided_slice %187 {offsets = [0, 128], sizes = [8, 128], strides = [1, 1]} : vector<8x512xf32> to vector<8x128xf32>
    %195 = arith.negf %194 : vector<8x128xf32>
    %196 = math.exp %195 : vector<8x128xf32>
    %cst_49 = arith.constant 1.000000e+00 : f32
    %197 = vector.broadcast %cst_49 : f32 to vector<8x128xf32>
    %198 = arith.addf %197, %196 : vector<8x128xf32>
    %199 = arith.divf %197, %198 : vector<8x128xf32>
    %200 = vector.extract_strided_slice %187 {offsets = [0, 256], sizes = [8, 128], strides = [1, 1]} : vector<8x512xf32> to vector<8x128xf32>
    %201 = math.tanh %200 : vector<8x128xf32>
    %202 = vector.extract_strided_slice %187 {offsets = [0, 384], sizes = [8, 128], strides = [1, 1]} : vector<8x512xf32> to vector<8x128xf32>
    %203 = arith.negf %202 : vector<8x128xf32>
    %204 = math.exp %203 : vector<8x128xf32>
    %cst_50 = arith.constant 1.000000e+00 : f32
    %205 = vector.broadcast %cst_50 : f32 to vector<8x128xf32>
    %206 = arith.addf %205, %204 : vector<8x128xf32>
    %207 = arith.divf %205, %206 : vector<8x128xf32>
    %208 = arith.mulf %199, %181 : vector<8x128xf32>
    %209 = arith.mulf %193, %201 : vector<8x128xf32>
    %210 = arith.addf %208, %209 : vector<8x128xf32>
    %211 = math.tanh %210 : vector<8x128xf32>
    %212 = arith.mulf %207, %211 : vector<8x128xf32>
    %213 = arith.truncf %212 : vector<8x128xf32> to vector<8x128xbf16>
    %c0_51 = arith.constant 0 : index
    %c0_52 = arith.constant 0 : index
    %214 = vector.load %arg2[%c0_51, %c0_52] : memref<128x512xbf16, #tpu.memory_space<vmem>>, vector<128x512xbf16>
    %cst_53 = arith.constant dense<0.000000e+00> : vector<8x512xf32>
    %215 = tpu.matmul %213, %214, %cst_53 {dimension_numbers = #tpu.dot_dimension_numbers<[1], [0], [0], [1], [0, 0, 1, 1], [], []>} : vector<8x128xbf16>, vector<128x512xbf16>, vector<8x512xf32> -> vector<8x512xf32>
    %216 = arith.addf %6, %215 : vector<8x512xf32>
    %217 = vector.extract_strided_slice %216 {offsets = [0, 0], sizes = [8, 128], strides = [1, 1]} : vector<8x512xf32> to vector<8x128xf32>
    %218 = arith.negf %217 : vector<8x128xf32>
    %219 = math.exp %218 : vector<8x128xf32>
    %cst_54 = arith.constant 1.000000e+00 : f32
    %220 = vector.broadcast %cst_54 : f32 to vector<8x128xf32>
    %221 = arith.addf %220, %219 : vector<8x128xf32>
    %222 = arith.divf %220, %221 : vector<8x128xf32>
    %223 = vector.extract_strided_slice %216 {offsets = [0, 128], sizes = [8, 128], strides = [1, 1]} : vector<8x512xf32> to vector<8x128xf32>
    %224 = arith.negf %223 : vector<8x128xf32>
    %225 = math.exp %224 : vector<8x128xf32>
    %cst_55 = arith.constant 1.000000e+00 : f32
    %226 = vector.broadcast %cst_55 : f32 to vector<8x128xf32>
    %227 = arith.addf %226, %225 : vector<8x128xf32>
    %228 = arith.divf %226, %227 : vector<8x128xf32>
    %229 = vector.extract_strided_slice %216 {offsets = [0, 256], sizes = [8, 128], strides = [1, 1]} : vector<8x512xf32> to vector<8x128xf32>
    %230 = math.tanh %229 : vector<8x128xf32>
    %231 = vector.extract_strided_slice %216 {offsets = [0, 384], sizes = [8, 128], strides = [1, 1]} : vector<8x512xf32> to vector<8x128xf32>
    %232 = arith.negf %231 : vector<8x128xf32>
    %233 = math.exp %232 : vector<8x128xf32>
    %cst_56 = arith.constant 1.000000e+00 : f32
    %234 = vector.broadcast %cst_56 : f32 to vector<8x128xf32>
    %235 = arith.addf %234, %233 : vector<8x128xf32>
    %236 = arith.divf %234, %235 : vector<8x128xf32>
    %237 = arith.mulf %228, %210 : vector<8x128xf32>
    %238 = arith.mulf %222, %230 : vector<8x128xf32>
    %239 = arith.addf %237, %238 : vector<8x128xf32>
    %240 = math.tanh %239 : vector<8x128xf32>
    %241 = arith.mulf %236, %240 : vector<8x128xf32>
    %242 = tpu.concatenate %38, %67, %96, %125, %154, %183, %212, %241 in 0 : vector<8x128xf32>, vector<8x128xf32>, vector<8x128xf32>, vector<8x128xf32>, vector<8x128xf32>, vector<8x128xf32>, vector<8x128xf32>, vector<8x128xf32> -> vector<64x128xf32>
    %243 = arith.truncf %242 : vector<64x128xf32> to vector<64x128xbf16>
    %c0_57 = arith.constant 0 : index
    %c0_58 = arith.constant 0 : index
    %244 = vector.load %arg4[%c0_57, %c0_58] : memref<128x8xbf16, #tpu.memory_space<vmem>>, vector<128x8xbf16>
    %cst_59 = arith.constant dense<0.000000e+00> : vector<64x8xf32>
    %245 = tpu.matmul %243, %244, %cst_59 {dimension_numbers = #tpu.dot_dimension_numbers<[1], [0], [0], [1], [0, 0, 1, 1], [], []>} : vector<64x128xbf16>, vector<128x8xbf16>, vector<64x8xf32> -> vector<64x8xf32>
    %246 = vector.broadcast %7 : vector<1x8xf32> to vector<64x8xf32>
    %247 = arith.addf %245, %246 : vector<64x8xf32>
    %c0_60 = arith.constant 0 : index
    %c0_61 = arith.constant 0 : index
    %248 = vector.load %arg6[%c0_60, %c0_61] : memref<64x8xf32, #tpu.memory_space<vmem>>, vector<64x8xf32>
    tpu.vector_store %arg6[%c0_60, %c0_61], %247 {strides = array<i32>} : memref<64x8xf32, #tpu.memory_space<vmem>>, vector<64x8xf32>,
    %249 = tpu.iota {dimensions = array<i32: 1>} : vector<64x8xi32>
    %cst_62 = arith.constant dense<0xFF800000> : vector<64xf32>
    %250 = vector.multi_reduction <maximumf>, %247, %cst_62 [1] : vector<64x8xf32> to vector<64xf32>
    %251 = vector.shape_cast %250 : vector<64xf32> to vector<64x1xf32>
    %252 = vector.broadcast %251 : vector<64x1xf32> to vector<64x8xf32>
    %253 = arith.cmpf oeq, %247, %252 : vector<64x8xf32>
    %c8_i32 = arith.constant 8 : i32
    %254 = vector.broadcast %c8_i32 : i32 to vector<64x8xi32>
    %255 = arith.select %253, %249, %254 : vector<64x8xi1>, vector<64x8xi32>
    %cst_63 = arith.constant dense<2147483647> : vector<64xi32>
    %256 = vector.multi_reduction <minsi>, %255, %cst_63 [1] : vector<64x8xi32> to vector<64xi32>
    %257 = vector.shape_cast %256 : vector<64xi32> to vector<64x1xi32>
    %258 = vector.broadcast %257 : vector<64x1xi32> to vector<64x8xi32>
    %259 = arith.cmpi eq, %249, %258 : vector<64x8xi32>
    %260 = arith.extui %259 : vector<64x8xi1> to vector<64x8xi32>
    %261 = arith.sitofp %260 : vector<64x8xi32> to vector<64x8xf32>
    %c0_64 = arith.constant 0 : index
    %c0_65 = arith.constant 0 : index
    %262 = vector.load %arg7[%c0_64, %c0_65] : memref<64x8xf32, #tpu.memory_space<vmem>>, vector<64x8xf32>
    tpu.vector_store %arg7[%c0_64, %c0_65], %261 {strides = array<i32>} : memref<64x8xf32, #tpu.memory_space<vmem>>, vector<64x8xf32>,
    return
  }
}

</mosaic_0001>

<llo_original>
// kernel: tpu_custom_call.1
$region0: #{tpu_custom_call.1}
  #allocation0 [shape = 'u32[]', space=smem, size = 0x4, offset = 0x4, fixed_abs, tag = 'smem constant byte address 0x4 - core index']
  #allocation1 [shape = 'u32[144,128]{1,0:T(1,128)}', space=vmem, size = 0x12000, scoped, tag = 'internal scratch']
  %s0 = inlined_call_operand.vmem [shape: f32[8,16], index: 0, kind: input, shape index: {}]
  %s1 = inlined_call_operand.vmem [shape: bf16[16,512], index: 1, kind: input, shape index: {}]
  %s2 = inlined_call_operand.hbm [shape: bf16[128,512], index: 2, kind: input, shape index: {}]
  %s3 = inlined_call_operand.vmem [shape: f32[1,512], index: 3, kind: input, shape index: {}]
  %s4 = inlined_call_operand.vmem [shape: bf16[128,8], index: 4, kind: input, shape index: {}]
  %s5 = inlined_call_operand.vmem [shape: f32[1,8], index: 5, kind: input, shape index: {}]
  %s6 = inlined_call_operand.vmem [shape: f32[64,8], index: 6, kind: output, shape index: {0}]
  %s7 = inlined_call_operand.vmem [shape: f32[64,8], index: 7, kind: output, shape index: {1}]
  %8 = xla_tuple %s6, %s7
  %s9 = sld [smem:[#allocation0]]
  $region46: #{tpu_custom_call.1} parent=0
    _
  %s11 = ssub.s32 1, %s9
  %s12 = scalar_select 0, %s11, %s9
  $region1: #{tpu_custom_call.1} parent=0
    #allocation2 [shape = 'u8[131072]{0}', space=vmem, size = 0x20000, scoped, tag = 'input window, operand 2, single buffered']
    #allocation3 [shape = 's32[1]{0}', space=sflag, size = 0x4, scoped, tag = 'scoped memory for tpu_custom_call.1']
    %13 = vsyncpa [#allocation3], 0
    // Predicated region
    $region2: #{tpu_custom_call.1} parent=1 // pred_check
      _
    $region3: #{tpu_custom_call.1} parent=1 // pred_check_branch
      %15 = sbr.rel (0) target = $region5
    $region4: #{tpu_custom_call.1} parent=1 // pred_region
      _
    $region5: #{tpu_custom_call.1} parent=1 // pred_fallthru
      _
    // Predicated region
    $region6: #{tpu_custom_call.1} parent=1 // pred_check
      _
    $region7: #{tpu_custom_call.1} parent=1 // pred_check_branch
      %17 = sbr.rel (0) target = $region9
    $region8: #{tpu_custom_call.1} parent=1 // pred_region
      _
    $region9: #{tpu_custom_call.1} parent=1 // pred_fallthru
      _
    // Predicated region
    $region10: #{tpu_custom_call.1} parent=1 // pred_check
      _
    $region11: #{tpu_custom_call.1} parent=1 // pred_check_branch
      %19 = sbr.rel (0) target = $region13
    $region12: #{tpu_custom_call.1} parent=1 // pred_region
      %s21 = ssub.s32 4096, 4096
      %22 = vsyncadd [#allocation3], %s21
      %s23 = sshll.u32 [#allocation2], 4
      %s24 = int_to_ptr.vmem [resolvable:$true] %s23
      %29 = dma.hbm_to_vmem [thread:$0]  %s2, 4096, %s24, [#allocation3], 256, 256, 16
    $region13: #{tpu_custom_call.1} parent=1 // pred_fallthru
      _
    // Predicated region
    $region14: #{tpu_custom_call.1} parent=1 // pred_check
      _
    $region15: #{tpu_custom_call.1} parent=1 // pred_check_branch
      %31 = sbr.rel (0) target = $region17
    $region16: #{tpu_custom_call.1} parent=1 // pred_region
      _
    $region17: #{tpu_custom_call.1} parent=1 // pred_fallthru
      _
    // Predicated region
    $region18: #{tpu_custom_call.1} parent=1 // pred_check
      _
    $region19: #{tpu_custom_call.1} parent=1 // pred_check_branch
      %33 = sbr.rel (0) target = $region21
    $region20: #{tpu_custom_call.1} parent=1 // pred_region
      _
    $region21: #{tpu_custom_call.1} parent=1 // pred_fallthru
      _
    // Predicated region
    $region22: #{tpu_custom_call.1} parent=1 // pred_check
      _
    $region23: #{tpu_custom_call.1} parent=1 // pred_check_branch
      %35 = sbr.rel (0) target = $region25
    $region24: #{tpu_custom_call.1} parent=1 // pred_region
      _
    $region25: #{tpu_custom_call.1} parent=1 // pred_fallthru
      _
    // Predicated region
    $region26: #{tpu_custom_call.1} parent=1 // pred_check
      _
    $region27: #{tpu_custom_call.1} parent=1 // pred_check_branch
      %37 = sbr.rel (0) target = $region29
    $region28: #{tpu_custom_call.1} parent=1 // pred_region
      %38 = dma.done [#allocation3], 4096
    $region29: #{tpu_custom_call.1} parent=1 // pred_fallthru
      _
    %v40 = vld [vmem:[%s0] sm:$0xff]
    %v41 = vpack.c.bf16 %v40, %v40
    %v42 = vld [vmem:[%s1] sm:$0xff]
    %v43 = vld [vmem:[%s1 + $0x8] sm:$0xff]
    %v44 = vld [vmem:[%s1 + $0x10] sm:$0xff]
    %v45 = vld [vmem:[%s1 + $0x18] sm:$0xff]
    %v46 = vld [vmem:[%s3] sm:$0xf]
    %v48 = vlaneseq
    %v49 = vshrl.u32 %v48, 7
    %v50 = vsub.s32 0, %v49
    %v51 = vrot.slane %v46, %v50
    %v52 = vlaneseq
    %v53 = vshrl.u32 %v52, 7
    %v54 = vsub.s32 1, %v53
    %v55 = vrot.slane %v46, %v54
    %v56 = vlaneseq
    %v57 = vshrl.u32 %v56, 7
    %v58 = vsub.s32 2, %v57
    %v59 = vrot.slane %v46, %v58
    %v60 = vlaneseq
    %v61 = vshrl.u32 %v60, 7
    %v62 = vsub.s32 3, %v61
    %v63 = vrot.slane %v46, %v62
    %v72 = vunpack.c.l.b16 %v42
    %v73 = vunpack.c.h.b16 %v42
    %v74 = vunpack.c.l.b16 %v43
    %v75 = vunpack.c.h.b16 %v43
    %v76 = vunpack.c.l.b16 %v44
    %v77 = vunpack.c.h.b16 %v44
    %v78 = vunpack.c.l.b16 %v45
    %v79 = vunpack.c.h.b16 %v45
    %v80 = vpack.c.b16 %v76, %v72
    %v81 = vpack.c.b16 %v77, %v73
    %v82 = vpack.c.b16 %v78, %v74
    %v83 = vpack.c.b16 %v79, %v75
    %vm88 = vcmask 130048
    %v90 = vsel %vm88, %v41, 0
    %92 = vmatprep.subr.bf16.mxu0 0
    %93 = vmatpush1.bf16.msra.mxu0 0
    %94 = vmatprep.subr.bf16.mxu0 0
    %95 = vmatpush1.bf16.msra.mxu0 0
    %96 = vmatprep.subr.bf16.mxu0 0
    %97 = vmatpush1.bf16.msra.mxu0 0
    %98 = vmatprep.subr.bf16.mxu0 0
    %99 = vmatpush1.bf16.msra.mxu0 0
    %100 = vmatprep.subr.bf16.mxu0 0
    %101 = vmatpush1.bf16.msra.mxu0 0
    %102 = vmatprep.subr.bf16.mxu0 0
    %103 = vmatpush1.bf16.msra.mxu0 0
    %104 = vmatprep.subr.bf16.mxu0 0
    %105 = vmatpush1.bf16.msra.mxu0 0
    %106 = vmatprep.subr.bf16.mxu0 %v81
    %107 = vmatpush1.bf16.msra.mxu0 %v80
    %108 = vmatprep.subr.bf16.mxu0 0
    %109 = vmatpush2.bf16.msra.mxu0 0
    %110 = vmatprep.subr.bf16.mxu0 0
    %111 = vmatpush2.bf16.msra.mxu0 0
    %112 = vmatprep.subr.bf16.mxu0 0
    %113 = vmatpush2.bf16.msra.mxu0 0
    %114 = vmatprep.subr.bf16.mxu0 0
    %115 = vmatpush2.bf16.msra.mxu0 0
    %116 = vmatprep.subr.bf16.mxu0 0
    %117 = vmatpush2.bf16.msra.mxu0 0
    %118 = vmatprep.subr.bf16.mxu0 0
    %119 = vmatpush2.bf16.msra.mxu0 0
    %120 = vmatprep.subr.bf16.mxu0 0
    %121 = vmatpush2.bf16.msra.mxu0 0
    %122 = vmatprep.subr.bf16.mxu0 0
    %123 = vmatpush2.bf16.msra.mxu0 0
    %124 = vmatprep.mubr.bf16.mxu0 0
    %125 = vmatmul.mubr.bf16.gmra.mxu0 %v90
    %v126 = vpop.f32.mrf.mxu0
    %v127 = vadd.f32 %v51, %v126
    %v128 = vpop.f32.mrf.mxu0
    %v129 = vadd.f32 %v55, %v128
    %v130 = vpop.f32.mrf.mxu0
    %v131 = vpop.f32.mrf.mxu0
    %132 = vdwg.mxu0
    %133 = vmatprep.subr.bf16.mxu0 0
    %134 = vmatpush1.bf16.msra.mxu0 0
    %135 = vmatprep.subr.bf16.mxu0 0
    %136 = vmatpush1.bf16.msra.mxu0 0
    %137 = vmatprep.subr.bf16.mxu0 0
    %138 = vmatpush1.bf16.msra.mxu0 0
    %139 = vmatprep.subr.bf16.mxu0 0
    %140 = vmatpush1.bf16.msra.mxu0 0
    %141 = vmatprep.subr.bf16.mxu0 0
    %142 = vmatpush1.bf16.msra.mxu0 0
    %143 = vmatprep.subr.bf16.mxu0 0
    %144 = vmatpush1.bf16.msra.mxu0 0
    %145 = vmatprep.subr.bf16.mxu0 0
    %146 = vmatpush1.bf16.msra.mxu0 0
    %147 = vmatprep.subr.bf16.mxu0 %v83
    %148 = vmatpush1.bf16.msra.mxu0 %v82
    %149 = vmatprep.subr.bf16.mxu0 0
    %150 = vmatpush2.bf16.msra.mxu0 0
    %151 = vmatprep.subr.bf16.mxu0 0
    %152 = vmatpush2.bf16.msra.mxu0 0
    %153 = vmatprep.subr.bf16.mxu0 0
    %154 = vmatpush2.bf16.msra.mxu0 0
    %155 = vmatprep.subr.bf16.mxu0 0
    %156 = vmatpush2.bf16.msra.mxu0 0
    %157 = vmatprep.subr.bf16.mxu0 0
    %158 = vmatpush2.bf16.msra.mxu0 0
    %159 = vmatprep.subr.bf16.mxu0 0
    %160 = vmatpush2.bf16.msra.mxu0 0
    %161 = vmatprep.subr.bf16.mxu0 0
    %162 = vmatpush2.bf16.msra.mxu0 0
    %163 = vmatprep.subr.bf16.mxu0 0
    %164 = vmatpush2.bf16.msra.mxu0 0
    %165 = vmatprep.mubr.bf16.mxu0 0
    %166 = vmatmul.mubr.bf16.gmra.mxu0 %v90
    %v167 = vpop.f32.mrf.mxu0
    %v168 = vadd.f32 %v59, %v167
    %v169 = vpop.f32.mrf.mxu0
    %v170 = vadd.f32 %v63, %v169
    %v171 = vpop.f32.mrf.mxu0
    %v172 = vpop.f32.mrf.mxu0
    %173 = vdwg.mxu0
    %v174 = vld [vmem:[%s5] sm:$0x1]
    %v175 = vld [vmem:[#allocation2] sm:$0xff]
    %v176 = vld [vmem:[#allocation2 + $0x8] sm:$0xff]
    %v177 = vld [vmem:[#allocation2 + $0x10] sm:$0xff]
    %v178 = vld [vmem:[#allocation2 + $0x18] sm:$0xff]
    %v179 = vld [vmem:[#allocation2 + $0x20] sm:$0xff]
    %v180 = vld [vmem:[#allocation2 + $0x28] sm:$0xff]
    %v181 = vld [vmem:[#allocation2 + $0x30] sm:$0xff]
    %v182 = vld [vmem:[#allocation2 + $0x38] sm:$0xff]
    %v183 = vld [vmem:[#allocation2 + $0x40] sm:$0xff]
    %v184 = vld [vmem:[#allocation2 + $0x48] sm:$0xff]
    %v185 = vld [vmem:[#allocation2 + $0x50] sm:$0xff]
    %v186 = vld [vmem:[#allocation2 + $0x58] sm:$0xff]
    %v187 = vld [vmem:[#allocation2 + $0x60] sm:$0xff]
    %v188 = vld [vmem:[#allocation2 + $0x68] sm:$0xff]
    %v189 = vld [vmem:[#allocation2 + $0x70] sm:$0xff]
    %v190 = vld [vmem:[#allocation2 + $0x78] sm:$0xff]
    %v191 = vld [vmem:[#allocation2 + $0x80] sm:$0xff]
    %v192 = vld [vmem:[#allocation2 + $0x88] sm:$0xff]
    %v193 = vld [vmem:[#allocation2 + $0x90] sm:$0xff]
    %v194 = vld [vmem:[#allocation2 + $0x98] sm:$0xff]
    %v195 = vld [vmem:[#allocation2 + $0xa0] sm:$0xff]
    %v196 = vld [vmem:[#allocation2 + $0xa8] sm:$0xff]
    %v197 = vld [vmem:[#allocation2 + $0xb0] sm:$0xff]
    %v198 = vld [vmem:[#allocation2 + $0xb8] sm:$0xff]
    %v199 = vld [vmem:[#allocation2 + $0xc0] sm:$0xff]
    %v200 = vld [vmem:[#allocation2 + $0xc8] sm:$0xff]
    %v201 = vld [vmem:[#allocation2 + $0xd0] sm:$0xff]
    %v202 = vld [vmem:[#allocation2 + $0xd8] sm:$0xff]
    %v203 = vld [vmem:[#allocation2 + $0xe0] sm:$0xff]
    %v204 = vld [vmem:[#allocation2 + $0xe8] sm:$0xff]
    %v205 = vld [vmem:[#allocation2 + $0xf0] sm:$0xff]
    %v206 = vld [vmem:[#allocation2 + $0xf8] sm:$0xff]
    %v239 = vunpack.c.l.b16 %v175
    %v240 = vunpack.c.h.b16 %v175
    %v241 = vunpack.c.l.b16 %v176
    %v242 = vunpack.c.h.b16 %v176
    %v243 = vunpack.c.l.b16 %v177
    %v244 = vunpack.c.h.b16 %v177
    %v245 = vunpack.c.l.b16 %v178
    %v246 = vunpack.c.h.b16 %v178
    %v247 = vunpack.c.l.b16 %v179
    %v248 = vunpack.c.h.b16 %v179
    %v249 = vunpack.c.l.b16 %v180
    %v250 = vunpack.c.h.b16 %v180
    %v251 = vunpack.c.l.b16 %v181
    %v252 = vunpack.c.h.b16 %v181
    %v253 = vunpack.c.l.b16 %v182
    %v254 = vunpack.c.h.b16 %v182
    %v255 = vunpack.c.l.b16 %v183
    %v256 = vunpack.c.h.b16 %v183
    %v257 = vunpack.c.l.b16 %v184
    %v258 = vunpack.c.h.b16 %v184
    %v259 = vunpack.c.l.b16 %v185
    %v260 = vunpack.c.h.b16 %v185
    %v261 = vunpack.c.l.b16 %v186
    %v262 = vunpack.c.h.b16 %v186
    %v263 = vunpack.c.l.b16 %v187
    %v264 = vunpack.c.h.b16 %v187
    %v265 = vunpack.c.l.b16 %v188
    %v266 = vunpack.c.h.b16 %v188
    %v267 = vunpack.c.l.b16 %v189
    %v268 = vunpack.c.h.b16 %v189
    %v269 = vunpack.c.l.b16 %v190
    %v270 = vunpack.c.h.b16 %v190
    %v271 = vunpack.c.l.b16 %v191
    %v272 = vunpack.c.h.b16 %v191
    %v273 = vunpack.c.l.b16 %v192
    %v274 = vunpack.c.h.b16 %v192
    %v275 = vunpack.c.l.b16 %v193
    %v276 = vunpack.c.h.b16 %v193
    %v277 = vunpack.c.l.b16 %v194
    %v278 = vunpack.c.h.b16 %v194
    %v279 = vunpack.c.l.b16 %v195
    %v280 = vunpack.c.h.b16 %v195
    %v281 = vunpack.c.l.b16 %v196
    %v282 = vunpack.c.h.b16 %v196
    %v283 = vunpack.c.l.b16 %v197
    %v284 = vunpack.c.h.b16 %v197
    %v285 = vunpack.c.l.b16 %v198
    %v286 = vunpack.c.h.b16 %v198
    %v287 = vunpack.c.l.b16 %v199
    %v288 = vunpack.c.h.b16 %v199
    %v289 = vunpack.c.l.b16 %v200
    %v290 = vunpack.c.h.b16 %v200
    %v291 = vunpack.c.l.b16 %v201
    %v292 = vunpack.c.h.b16 %v201
    %v293 = vunpack.c.l.b16 %v202
    %v294 = vunpack.c.h.b16 %v202
    %v295 = vunpack.c.l.b16 %v203
    %v296 = vunpack.c.h.b16 %v203
    %v297 = vunpack.c.l.b16 %v204
    %v298 = vunpack.c.h.b16 %v204
    %v299 = vunpack.c.l.b16 %v205
    %v300 = vunpack.c.h.b16 %v205
    %v301 = vunpack.c.l.b16 %v206
    %v302 = vunpack.c.h.b16 %v206
    %v303 = vpack.c.b16 %v243, %v239
    %v304 = vpack.c.b16 %v244, %v240
    %v305 = vpack.c.b16 %v245, %v241
    %v306 = vpack.c.b16 %v246, %v242
    %v307 = vpack.c.b16 %v251, %v247
    %v308 = vpack.c.b16 %v252, %v248
    %v309 = vpack.c.b16 %v253, %v249
    %v310 = vpack.c.b16 %v254, %v250
    %v311 = vpack.c.b16 %v259, %v255
    %v312 = vpack.c.b16 %v260, %v256
    %v313 = vpack.c.b16 %v261, %v257
    %v314 = vpack.c.b16 %v262, %v258
    %v315 = vpack.c.b16 %v267, %v263
    %v316 = vpack.c.b16 %v268, %v264
    %v317 = vpack.c.b16 %v269, %v265
    %v318 = vpack.c.b16 %v270, %v266
    %v319 = vpack.c.b16 %v275, %v271
    %v320 = vpack.c.b16 %v276, %v272
    %v321 = vpack.c.b16 %v277, %v273
    %v322 = vpack.c.b16 %v278, %v274
    %v323 = vpack.c.b16 %v283, %v279
    %v324 = vpack.c.b16 %v284, %v280
    %v325 = vpack.c.b16 %v285, %v281
    %v326 = vpack.c.b16 %v286, %v282
    %v327 = vpack.c.b16 %v291, %v287
    %v328 = vpack.c.b16 %v292, %v288
    %v329 = vpack.c.b16 %v293, %v289
    %v330 = vpack.c.b16 %v294, %v290
    %v331 = vpack.c.b16 %v299, %v295
    %v332 = vpack.c.b16 %v300, %v296
    %v333 = vpack.c.b16 %v301, %v297
    %v334 = vpack.c.b16 %v302, %v298
    %367 = vmatprep.subr.bf16.mxu0 %v332
    %368 = vmatpush1.bf16.msra.mxu0 %v331
    %369 = vmatprep.subr.bf16.mxu0 %v328
    %370 = vmatpush1.bf16.msra.mxu0 %v327
    %371 = vmatprep.subr.bf16.mxu0 %v324
    %372 = vmatpush1.bf16.msra.mxu0 %v323
    %373 = vmatprep.subr.bf16.mxu0 %v320
    %374 = vmatpush1.bf16.msra.mxu0 %v319
    %375 = vmatprep.subr.bf16.mxu0 %v316
    %376 = vmatpush1.bf16.msra.mxu0 %v315
    %377 = vmatprep.subr.bf16.mxu0 %v312
    %378 = vmatpush1.bf16.msra.mxu0 %v311
    %379 = vmatprep.subr.bf16.mxu0 %v308
    %380 = vmatpush1.bf16.msra.mxu0 %v307
    %381 = vmatprep.subr.bf16.mxu0 %v304
    %382 = vmatpush1.bf16.msra.mxu0 %v303
    %383 = vmatprep.subr.bf16.mxu0 0
    %384 = vmatpush2.bf16.msra.mxu0 0
    %385 = vmatprep.subr.bf16.mxu0 0
    %386 = vmatpush2.bf16.msra.mxu0 0
    %387 = vmatprep.subr.bf16.mxu0 0
    %388 = vmatpush2.bf16.msra.mxu0 0
    %389 = vmatprep.subr.bf16.mxu0 0
    %390 = vmatpush2.bf16.msra.mxu0 0
    %391 = vmatprep.subr.bf16.mxu0 0
    %392 = vmatpush2.bf16.msra.mxu0 0
    %393 = vmatprep.subr.bf16.mxu0 0
    %394 = vmatpush2.bf16.msra.mxu0 0
    %395 = vmatprep.subr.bf16.mxu0 0
    %396 = vmatpush2.bf16.msra.mxu0 0
    %397 = vmatprep.subr.bf16.mxu0 0
    %398 = vmatpush2.bf16.msra.mxu0 0
    %399 = vmatprep.mubr.bf16.mxu0 0
    %400 = vmatmul.mubr.bf16.gmra.mxu0 0
    %v401 = vpop.f32.mrf.mxu0
    %v402 = vadd.f32 0.0, %v401
    %v403 = vpop.f32.mrf.mxu0
    %v404 = vadd.f32 0.0, %v403
    %v405 = vpop.f32.mrf.mxu0
    %v406 = vpop.f32.mrf.mxu0
    %407 = vdwg.mxu0
    %408 = vmatprep.subr.bf16.mxu0 %v334
    %409 = vmatpush1.bf16.msra.mxu0 %v333
    %410 = vmatprep.subr.bf16.mxu0 %v330
    %411 = vmatpush1.bf16.msra.mxu0 %v329
    %412 = vmatprep.subr.bf16.mxu0 %v326
    %413 = vmatpush1.bf16.msra.mxu0 %v325
    %414 = vmatprep.subr.bf16.mxu0 %v322
    %415 = vmatpush1.bf16.msra.mxu0 %v321
    %416 = vmatprep.subr.bf16.mxu0 %v318
    %417 = vmatpush1.bf16.msra.mxu0 %v317
    %418 = vmatprep.subr.bf16.mxu0 %v314
    %419 = vmatpush1.bf16.msra.mxu0 %v313
    %420 = vmatprep.subr.bf16.mxu0 %v310
    %421 = vmatpush1.bf16.msra.mxu0 %v309
    %422 = vmatprep.subr.bf16.mxu0 %v306
    %423 = vmatpush1.bf16.msra.mxu0 %v305
    %424 = vmatprep.subr.bf16.mxu0 0
    %425 = vmatpush2.bf16.msra.mxu0 0
    %426 = vmatprep.subr.bf16.mxu0 0
    %427 = vmatpush2.bf16.msra.mxu0 0
    %428 = vmatprep.subr.bf16.mxu0 0
    %429 = vmatpush2.bf16.msra.mxu0 0
    %430 = vmatprep.subr.bf16.mxu0 0
    %431 = vmatpush2.bf16.msra.mxu0 0
    %432 = vmatprep.subr.bf16.mxu0 0
    %433 = vmatpush2.bf16.msra.mxu0 0
    %434 = vmatprep.subr.bf16.mxu0 0
    %435 = vmatpush2.bf16.msra.mxu0 0
    %436 = vmatprep.subr.bf16.mxu0 0
    %437 = vmatpush2.bf16.msra.mxu0 0
    %438 = vmatprep.subr.bf16.mxu0 0
    %439 = vmatpush2.bf16.msra.mxu0 0
    %440 = vmatprep.mubr.bf16.mxu0 0
    %441 = vmatmul.mubr.bf16.gmra.mxu0 0
    %v442 = vpop.f32.mrf.mxu0
    %v443 = vadd.f32 0.0, %v442
    %v444 = vpop.f32.mrf.mxu0
    %v445 = vadd.f32 0.0, %v444
    %v446 = vpop.f32.mrf.mxu0
    %v447 = vpop.f32.mrf.mxu0
    %448 = vdwg.mxu0
    %v449 = vadd.f32 %v127, %v402
    %v450 = vadd.f32 %v129, %v404
    %v451 = vadd.f32 %v168, %v443
    %v452 = vadd.f32 %v170, %v445
    %v453 = vxor.u32 %v449, 2147483648
    %v454 = vmul.f32 %v453, 1.442695
    %v455 = vpow.pop %v454
    %v456 = vadd.f32 %v455, 1.0
    %v457 = vrcp.pop %v456
    %v458 = vmul.f32 1.0, %v457
    %v459 = vxor.u32 %v450, 2147483648
    %v460 = vmul.f32 %v459, 1.442695
    %v461 = vpow.pop %v460
    %v462 = vadd.f32 %v461, 1.0
    %v463 = vrcp.pop %v462
    %v464 = vmul.f32 1.0, %v463
    %v465 = vtanh.pop %v451
    %v466 = vxor.u32 %v452, 2147483648
    %v467 = vmul.f32 %v466, 1.442695
    %v468 = vpow.pop %v467
    %v469 = vadd.f32 %v468, 1.0
    %v470 = vrcp.pop %v469
    %v471 = vmul.f32 1.0, %v470
    %v472 = vmul.f32 %v464, 0.0
    %v473 = vmul.f32 %v458, %v465
    %v474 = vadd.f32 %v472, %v473
    %v475 = vtanh.pop %v474
    %v476 = vmul.f32 %v471, %v475
    %v477 = vpack.c.bf16 %v476, %v476
    %478 = vmatprep.subr.bf16.mxu0 %v332
    %479 = vmatpush1.bf16.msra.mxu0 %v331
    %480 = vmatprep.subr.bf16.mxu0 %v328
    %481 = vmatpush1.bf16.msra.mxu0 %v327
    %482 = vmatprep.subr.bf16.mxu0 %v324
    %483 = vmatpush1.bf16.msra.mxu0 %v323
    %484 = vmatprep.subr.bf16.mxu0 %v320
    %485 = vmatpush1.bf16.msra.mxu0 %v319
    %486 = vmatprep.subr.bf16.mxu0 %v316
    %487 = vmatpush1.bf16.msra.mxu0 %v315
    %488 = vmatprep.subr.bf16.mxu0 %v312
    %489 = vmatpush1.bf16.msra.mxu0 %v311
    %490 = vmatprep.subr.bf16.mxu0 %v308
    %491 = vmatpush1.bf16.msra.mxu0 %v307
    %492 = vmatprep.subr.bf16.mxu0 %v304
    %493 = vmatpush1.bf16.msra.mxu0 %v303
    %494 = vmatprep.subr.bf16.mxu0 0
    %495 = vmatpush2.bf16.msra.mxu0 0
    %496 = vmatprep.subr.bf16.mxu0 0
    %497 = vmatpush2.bf16.msra.mxu0 0
    %498 = vmatprep.subr.bf16.mxu0 0
    %499 = vmatpush2.bf16.msra.mxu0 0
    %500 = vmatprep.subr.bf16.mxu0 0
    %501 = vmatpush2.bf16.msra.mxu0 0
    %502 = vmatprep.subr.bf16.mxu0 0
    %503 = vmatpush2.bf16.msra.mxu0 0
    %504 = vmatprep.subr.bf16.mxu0 0
    %505 = vmatpush2.bf16.msra.mxu0 0
    %506 = vmatprep.subr.bf16.mxu0 0
    %507 = vmatpush2.bf16.msra.mxu0 0
    %508 = vmatprep.subr.bf16.mxu0 0
    %509 = vmatpush2.bf16.msra.mxu0 0
    %510 = vmatprep.mubr.bf16.mxu0 0
    %511 = vmatmul.mubr.bf16.gmra.mxu0 %v477
    %v512 = vpop.f32.mrf.mxu0
    %v513 = vadd.f32 0.0, %v512
    %v514 = vpop.f32.mrf.mxu0
    %v515 = vadd.f32 0.0, %v514
    %v516 = vpop.f32.mrf.mxu0
    %v517 = vpop.f32.mrf.mxu0
    %518 = vdwg.mxu0
    %519 = vmatprep.subr.bf16.mxu0 %v334
    %520 = vmatpush1.bf16.msra.mxu0 %v333
    %521 = vmatprep.subr.bf16.mxu0 %v330
    %522 = vmatpush1.bf16.msra.mxu0 %v329
    %523 = vmatprep.subr.bf16.mxu0 %v326
    %524 = vmatpush1.bf16.msra.mxu0 %v325
    %525 = vmatprep.subr.bf16.mxu0 %v322
    %526 = vmatpush1.bf16.msra.mxu0 %v321
    %527 = vmatprep.subr.bf16.mxu0 %v318
    %528 = vmatpush1.bf16.msra.mxu0 %v317
    %529 = vmatprep.subr.bf16.mxu0 %v314
    %530 = vmatpush1.bf16.msra.mxu0 %v313
    %531 = vmatprep.subr.bf16.mxu0 %v310
    %532 = vmatpush1.bf16.msra.mxu0 %v309
    %533 = vmatprep.subr.bf16.mxu0 %v306
    %534 = vmatpush1.bf16.msra.mxu0 %v305
    %535 = vmatprep.subr.bf16.mxu0 0
    %536 = vmatpush2.bf16.msra.mxu0 0
    %537 = vmatprep.subr.bf16.mxu0 0
    %538 = vmatpush2.bf16.msra.mxu0 0
    %539 = vmatprep.subr.bf16.mxu0 0
    %540 = vmatpush2.bf16.msra.mxu0 0
    %541 = vmatprep.subr.bf16.mxu0 0
    %542 = vmatpush2.bf16.msra.mxu0 0
    %543 = vmatprep.subr.bf16.mxu0 0
    %544 = vmatpush2.bf16.msra.mxu0 0
    %545 = vmatprep.subr.bf16.mxu0 0
    %546 = vmatpush2.bf16.msra.mxu0 0
    %547 = vmatprep.subr.bf16.mxu0 0
    %548 = vmatpush2.bf16.msra.mxu0 0
    %549 = vmatprep.subr.bf16.mxu0 0
    %550 = vmatpush2.bf16.msra.mxu0 0
    %551 = vmatprep.mubr.bf16.mxu0 0
    %552 = vmatmul.mubr.bf16.gmra.mxu0 %v477
    %v553 = vpop.f32.mrf.mxu0
    %v554 = vadd.f32 0.0, %v553
    %v555 = vpop.f32.mrf.mxu0
    %v556 = vadd.f32 0.0, %v555
    %v557 = vpop.f32.mrf.mxu0
    %v558 = vpop.f32.mrf.mxu0
    %559 = vdwg.mxu0
    %v560 = vadd.f32 %v127, %v513
    %v561 = vadd.f32 %v129, %v515
    %v562 = vadd.f32 %v168, %v554
    %v563 = vadd.f32 %v170, %v556
    %v564 = vxor.u32 %v560, 2147483648
    %v565 = vmul.f32 %v564, 1.442695
    %v566 = vpow.pop %v565
    %v567 = vadd.f32 %v566, 1.0
    %v568 = vrcp.pop %v567
    %v569 = vmul.f32 1.0, %v568
    %v570 = vxor.u32 %v561, 2147483648
    %v571 = vmul.f32 %v570, 1.442695
    %v572 = vpow.pop %v571
    %v573 = vadd.f32 %v572, 1.0
    %v574 = vrcp.pop %v573
    %v575 = vmul.f32 1.0, %v574
    %v576 = vtanh.pop %v562
    %v577 = vxor.u32 %v563, 2147483648
    %v578 = vmul.f32 %v577, 1.442695
    %v579 = vpow.pop %v578
    %v580 = vadd.f32 %v579, 1.0
    %v581 = vrcp.pop %v580
    %v582 = vmul.f32 1.0, %v581
    %v583 = vmul.f32 %v575, %v474
    %v584 = vmul.f32 %v569, %v576
    %v585 = vadd.f32 %v583, %v584
    %v586 = vtanh.pop %v585
    %v587 = vmul.f32 %v582, %v586
    %v588 = vpack.c.bf16 %v587, %v587
    %589 = vmatprep.subr.bf16.mxu0 %v332
    %590 = vmatpush1.bf16.msra.mxu0 %v331
    %591 = vmatprep.subr.bf16.mxu0 %v328
    %592 = vmatpush1.bf16.msra.mxu0 %v327
    %593 = vmatprep.subr.bf16.mxu0 %v324
    %594 = vmatpush1.bf16.msra.mxu0 %v323
    %595 = vmatprep.subr.bf16.mxu0 %v320
    %596 = vmatpush1.bf16.msra.mxu0 %v319
    %597 = vmatprep.subr.bf16.mxu0 %v316
    %598 = vmatpush1.bf16.msra.mxu0 %v315
    %599 = vmatprep.subr.bf16.mxu0 %v312
    %600 = vmatpush1.bf16.msra.mxu0 %v311
    %601 = vmatprep.subr.bf16.mxu0 %v308
    %602 = vmatpush1.bf16.msra.mxu0 %v307
    %603 = vmatprep.subr.bf16.mxu0 %v304
    %604 = vmatpush1.bf16.msra.mxu0 %v303
    %605 = vmatprep.subr.bf16.mxu0 0
    %606 = vmatpush2.bf16.msra.mxu0 0
    %607 = vmatprep.subr.bf16.mxu0 0
    %608 = vmatpush2.bf16.msra.mxu0 0
    %609 = vmatprep.subr.bf16.mxu0 0
    %610 = vmatpush2.bf16.msra.mxu0 0
    %611 = vmatprep.subr.bf16.mxu0 0
    %612 = vmatpush2.bf16.msra.mxu0 0
    %613 = vmatprep.subr.bf16.mxu0 0
    %614 = vmatpush2.bf16.msra.mxu0 0
    %615 = vmatprep.subr.bf16.mxu0 0
    %616 = vmatpush2.bf16.msra.mxu0 0
    %617 = vmatprep.subr.bf16.mxu0 0
    %618 = vmatpush2.bf16.msra.mxu0 0
    %619 = vmatprep.subr.bf16.mxu0 0
    %620 = vmatpush2.bf16.msra.mxu0 0
    %621 = vmatprep.mubr.bf16.mxu0 0
    %622 = vmatmul.mubr.bf16.gmra.mxu0 %v588
    %v623 = vpop.f32.mrf.mxu0
    %v624 = vadd.f32 0.0, %v623
    %v625 = vpop.f32.mrf.mxu0
    %v626 = vadd.f32 0.0, %v625
    %v627 = vpop.f32.mrf.mxu0
    %v628 = vpop.f32.mrf.mxu0
    %629 = vdwg.mxu0
    %630 = vmatprep.subr.bf16.mxu0 %v334
    %631 = vmatpush1.bf16.msra.mxu0 %v333
    %632 = vmatprep.subr.bf16.mxu0 %v330
    %633 = vmatpush1.bf16.msra.mxu0 %v329
    %634 = vmatprep.subr.bf16.mxu0 %v326
    %635 = vmatpush1.bf16.msra.mxu0 %v325
    %636 = vmatprep.subr.bf16.mxu0 %v322
    %637 = vmatpush1.bf16.msra.mxu0 %v321
    %638 = vmatprep.subr.bf16.mxu0 %v318
    %639 = vmatpush1.bf16.msra.mxu0 %v317
    %640 = vmatprep.subr.bf16.mxu0 %v314
    %641 = vmatpush1.bf16.msra.mxu0 %v313
    %642 = vmatprep.subr.bf16.mxu0 %v310
    %643 = vmatpush1.bf16.msra.mxu0 %v309
    %644 = vmatprep.subr.bf16.mxu0 %v306
    %645 = vmatpush1.bf16.msra.mxu0 %v305
    %646 = vmatprep.subr.bf16.mxu0 0
    %647 = vmatpush2.bf16.msra.mxu0 0
    %648 = vmatprep.subr.bf16.mxu0 0
    %649 = vmatpush2.bf16.msra.mxu0 0
    %650 = vmatprep.subr.bf16.mxu0 0
    %651 = vmatpush2.bf16.msra.mxu0 0
    %652 = vmatprep.subr.bf16.mxu0 0
    %653 = vmatpush2.bf16.msra.mxu0 0
    %654 = vmatprep.subr.bf16.mxu0 0
    %655 = vmatpush2.bf16.msra.mxu0 0
    %656 = vmatprep.subr.bf16.mxu0 0
    %657 = vmatpush2.bf16.msra.mxu0 0
    %658 = vmatprep.subr.bf16.mxu0 0
    %659 = vmatpush2.bf16.msra.mxu0 0
    %660 = vmatprep.subr.bf16.mxu0 0
    %661 = vmatpush2.bf16.msra.mxu0 0
    %662 = vmatprep.mubr.bf16.mxu0 0
    %663 = vmatmul.mubr.bf16.gmra.mxu0 %v588
    %v664 = vpop.f32.mrf.mxu0
    %v665 = vadd.f32 0.0, %v664
    %v666 = vpop.f32.mrf.mxu0
    %v667 = vadd.f32 0.0, %v666
    %v668 = vpop.f32.mrf.mxu0
    %v669 = vpop.f32.mrf.mxu0
    %670 = vdwg.mxu0
    %v671 = vadd.f32 %v127, %v624
    %v672 = vadd.f32 %v129, %v626
    %v673 = vadd.f32 %v168, %v665
    %v674 = vadd.f32 %v170, %v667
    %v675 = vxor.u32 %v671, 2147483648
    %v676 = vmul.f32 %v675, 1.442695
    %v677 = vpow.pop %v676
    %v678 = vadd.f32 %v677, 1.0
    %v679 = vrcp.pop %v678
    %v680 = vmul.f32 1.0, %v679
    %v681 = vxor.u32 %v672, 2147483648
    %v682 = vmul.f32 %v681, 1.442695
    %v683 = vpow.pop %v682
    %v684 = vadd.f32 %v683, 1.0
    %v685 = vrcp.pop %v684
    %v686 = vmul.f32 1.0, %v685
    %v687 = vtanh.pop %v673
    %v688 = vxor.u32 %v674, 2147483648
    %v689 = vmul.f32 %v688, 1.442695
    %v690 = vpow.pop %v689
    %v691 = vadd.f32 %v690, 1.0
    %v692 = vrcp.pop %v691
    %v693 = vmul.f32 1.0, %v692
    %v694 = vmul.f32 %v686, %v585
    %v695 = vmul.f32 %v680, %v687
    %v696 = vadd.f32 %v694, %v695
    %v697 = vtanh.pop %v696
    %v698 = vmul.f32 %v693, %v697
    %v699 = vpack.c.bf16 %v698, %v698
    %700 = vmatprep.subr.bf16.mxu0 %v332
    %701 = vmatpush1.bf16.msra.mxu0 %v331
    %702 = vmatprep.subr.bf16.mxu0 %v328
    %703 = vmatpush1.bf16.msra.mxu0 %v327
    %704 = vmatprep.subr.bf16.mxu0 %v324
    %705 = vmatpush1.bf16.msra.mxu0 %v323
    %706 = vmatprep.subr.bf16.mxu0 %v320
    %707 = vmatpush1.bf16.msra.mxu0 %v319
    %708 = vmatprep.subr.bf16.mxu0 %v316
    %709 = vmatpush1.bf16.msra.mxu0 %v315
    %710 = vmatprep.subr.bf16.mxu0 %v312
    %711 = vmatpush1.bf16.msra.mxu0 %v311
    %712 = vmatprep.subr.bf16.mxu0 %v308
    %713 = vmatpush1.bf16.msra.mxu0 %v307
    %714 = vmatprep.subr.bf16.mxu0 %v304
    %715 = vmatpush1.bf16.msra.mxu0 %v303
    %716 = vmatprep.subr.bf16.mxu0 0
    %717 = vmatpush2.bf16.msra.mxu0 0
    %718 = vmatprep.subr.bf16.mxu0 0
    %719 = vmatpush2.bf16.msra.mxu0 0
    %720 = vmatprep.subr.bf16.mxu0 0
    %721 = vmatpush2.bf16.msra.mxu0 0
    %722 = vmatprep.subr.bf16.mxu0 0
    %723 = vmatpush2.bf16.msra.mxu0 0
    %724 = vmatprep.subr.bf16.mxu0 0
    %725 = vmatpush2.bf16.msra.mxu0 0
    %726 = vmatprep.subr.bf16.mxu0 0
    %727 = vmatpush2.bf16.msra.mxu0 0
    %728 = vmatprep.subr.bf16.mxu0 0
    %729 = vmatpush2.bf16.msra.mxu0 0
    %730 = vmatprep.subr.bf16.mxu0 0
    %731 = vmatpush2.bf16.msra.mxu0 0
    %732 = vmatprep.mubr.bf16.mxu0 0
    %733 = vmatmul.mubr.bf16.gmra.mxu0 %v699
    %v734 = vpop.f32.mrf.mxu0
    %v735 = vadd.f32 0.0, %v734
    %v736 = vpop.f32.mrf.mxu0
    %v737 = vadd.f32 0.0, %v736
    %v738 = vpop.f32.mrf.mxu0
    %v739 = vpop.f32.mrf.mxu0
    %740 = vdwg.mxu0
    %741 = vmatprep.subr.bf16.mxu0 %v334
    %742 = vmatpush1.bf16.msra.mxu0 %v333
    %743 = vmatprep.subr.bf16.mxu0 %v330
    %744 = vmatpush1.bf16.msra.mxu0 %v329
    %745 = vmatprep.subr.bf16.mxu0 %v326
    %746 = vmatpush1.bf16.msra.mxu0 %v325
    %747 = vmatprep.subr.bf16.mxu0 %v322
    %748 = vmatpush1.bf16.msra.mxu0 %v321
    %749 = vmatprep.subr.bf16.mxu0 %v318
    %750 = vmatpush1.bf16.msra.mxu0 %v317
    %751 = vmatprep.subr.bf16.mxu0 %v314
    %752 = vmatpush1.bf16.msra.mxu0 %v313
    %753 = vmatprep.subr.bf16.mxu0 %v310
    %754 = vmatpush1.bf16.msra.mxu0 %v309
    %755 = vmatprep.subr.bf16.mxu0 %v306
    %756 = vmatpush1.bf16.msra.mxu0 %v305
    %757 = vmatprep.subr.bf16.mxu0 0
    %758 = vmatpush2.bf16.msra.mxu0 0
    %759 = vmatprep.subr.bf16.mxu0 0
    %760 = vmatpush2.bf16.msra.mxu0 0
    %761 = vmatprep.subr.bf16.mxu0 0
    %762 = vmatpush2.bf16.msra.mxu0 0
    %763 = vmatprep.subr.bf16.mxu0 0
    %764 = vmatpush2.bf16.msra.mxu0 0
    %765 = vmatprep.subr.bf16.mxu0 0
    %766 = vmatpush2.bf16.msra.mxu0 0
    %767 = vmatprep.subr.bf16.mxu0 0
    %768 = vmatpush2.bf16.msra.mxu0 0
    %769 = vmatprep.subr.bf16.mxu0 0
    %770 = vmatpush2.bf16.msra.mxu0 0
    %771 = vmatprep.subr.bf16.mxu0 0
    %772 = vmatpush2.bf16.msra.mxu0 0
    %773 = vmatprep.mubr.bf16.mxu0 0
    %774 = vmatmul.mubr.bf16.gmra.mxu0 %v699
    %v775 = vpop.f32.mrf.mxu0
    %v776 = vadd.f32 0.0, %v775
    %v777 = vpop.f32.mrf.mxu0
    %v778 = vadd.f32 0.0, %v777
    %v779 = vpop.f32.mrf.mxu0
    %v780 = vpop.f32.mrf.mxu0
    %781 = vdwg.mxu0
    %v782 = vadd.f32 %v127, %v735
    %v783 = vadd.f32 %v129, %v737
    %v784 = vadd.f32 %v168, %v776
    %v785 = vadd.f32 %v170, %v778
    %v786 = vxor.u32 %v782, 2147483648
    %v787 = vmul.f32 %v786, 1.442695
    %v788 = vpow.pop %v787
    %v789 = vadd.f32 %v788, 1.0
    %v790 = vrcp.pop %v789
    %v791 = vmul.f32 1.0, %v790
    %v792 = vxor.u32 %v783, 2147483648
    %v793 = vmul.f32 %v792, 1.442695
    %v794 = vpow.pop %v793
    %v795 = vadd.f32 %v794, 1.0
    %v796 = vrcp.pop %v795
    %v797 = vmul.f32 1.0, %v796
    %v798 = vtanh.pop %v784
    %v799 = vxor.u32 %v785, 2147483648
    %v800 = vmul.f32 %v799, 1.442695
    %v801 = vpow.pop %v800
    %v802 = vadd.f32 %v801, 1.0
    %v803 = vrcp.pop %v802
    %v804 = vmul.f32 1.0, %v803
    %v805 = vmul.f32 %v797, %v696
    %v806 = vmul.f32 %v791, %v798
    %v807 = vadd.f32 %v805, %v806
    %v808 = vtanh.pop %v807
    %v809 = vmul.f32 %v804, %v808
    %v810 = vpack.c.bf16 %v809, %v809
    %811 = vmatprep.subr.bf16.mxu0 %v332
    %812 = vmatpush1.bf16.msra.mxu0 %v331
    %813 = vmatprep.subr.bf16.mxu0 %v328
    %814 = vmatpush1.bf16.msra.mxu0 %v327
    %815 = vmatprep.subr.bf16.mxu0 %v324
    %816 = vmatpush1.bf16.msra.mxu0 %v323
    %817 = vmatprep.subr.bf16.mxu0 %v320
    %818 = vmatpush1.bf16.msra.mxu0 %v319
    %819 = vmatprep.subr.bf16.mxu0 %v316
    %820 = vmatpush1.bf16.msra.mxu0 %v315
    %821 = vmatprep.subr.bf16.mxu0 %v312
    %822 = vmatpush1.bf16.msra.mxu0 %v311
    %823 = vmatprep.subr.bf16.mxu0 %v308
    %824 = vmatpush1.bf16.msra.mxu0 %v307
    %825 = vmatprep.subr.bf16.mxu0 %v304
    %826 = vmatpush1.bf16.msra.mxu0 %v303
    %827 = vmatprep.subr.bf16.mxu0 0
    %828 = vmatpush2.bf16.msra.mxu0 0
    %829 = vmatprep.subr.bf16.mxu0 0
    %830 = vmatpush2.bf16.msra.mxu0 0
    %831 = vmatprep.subr.bf16.mxu0 0
    %832 = vmatpush2.bf16.msra.mxu0 0
    %833 = vmatprep.subr.bf16.mxu0 0
    %834 = vmatpush2.bf16.msra.mxu0 0
    %835 = vmatprep.subr.bf16.mxu0 0
    %836 = vmatpush2.bf16.msra.mxu0 0
    %837 = vmatprep.subr.bf16.mxu0 0
    %838 = vmatpush2.bf16.msra.mxu0 0
    %839 = vmatprep.subr.bf16.mxu0 0
    %840 = vmatpush2.bf16.msra.mxu0 0
    %841 = vmatprep.subr.bf16.mxu0 0
    %842 = vmatpush2.bf16.msra.mxu0 0
    %843 = vmatprep.mubr.bf16.mxu0 0
    %844 = vmatmul.mubr.bf16.gmra.mxu0 %v810
    %v845 = vpop.f32.mrf.mxu0
    %v846 = vadd.f32 0.0, %v845
    %v847 = vpop.f32.mrf.mxu0
    %v848 = vadd.f32 0.0, %v847
    %v849 = vpop.f32.mrf.mxu0
    %v850 = vpop.f32.mrf.mxu0
    %851 = vdwg.mxu0
    %852 = vmatprep.subr.bf16.mxu0 %v334
    %853 = vmatpush1.bf16.msra.mxu0 %v333
    %854 = vmatprep.subr.bf16.mxu0 %v330
    %855 = vmatpush1.bf16.msra.mxu0 %v329
    %856 = vmatprep.subr.bf16.mxu0 %v326
    %857 = vmatpush1.bf16.msra.mxu0 %v325
    %858 = vmatprep.subr.bf16.mxu0 %v322
    %859 = vmatpush1.bf16.msra.mxu0 %v321
    %860 = vmatprep.subr.bf16.mxu0 %v318
    %861 = vmatpush1.bf16.msra.mxu0 %v317
    %862 = vmatprep.subr.bf16.mxu0 %v314
    %863 = vmatpush1.bf16.msra.mxu0 %v313
    %864 = vmatprep.subr.bf16.mxu0 %v310
    %865 = vmatpush1.bf16.msra.mxu0 %v309
    %866 = vmatprep.subr.bf16.mxu0 %v306
    %867 = vmatpush1.bf16.msra.mxu0 %v305
    %868 = vmatprep.subr.bf16.mxu0 0
    %869 = vmatpush2.bf16.msra.mxu0 0
    %870 = vmatprep.subr.bf16.mxu0 0
    %871 = vmatpush2.bf16.msra.mxu0 0
    %872 = vmatprep.subr.bf16.mxu0 0
    %873 = vmatpush2.bf16.msra.mxu0 0
    %874 = vmatprep.subr.bf16.mxu0 0
    %875 = vmatpush2.bf16.msra.mxu0 0
    %876 = vmatprep.subr.bf16.mxu0 0
    %877 = vmatpush2.bf16.msra.mxu0 0
    %878 = vmatprep.subr.bf16.mxu0 0
    %879 = vmatpush2.bf16.msra.mxu0 0
    %880 = vmatprep.subr.bf16.mxu0 0
    %881 = vmatpush2.bf16.msra.mxu0 0
    %882 = vmatprep.subr.bf16.mxu0 0
    %883 = vmatpush2.bf16.msra.mxu0 0
    %884 = vmatprep.mubr.bf16.mxu0 0
    %885 = vmatmul.mubr.bf16.gmra.mxu0 %v810
    %v886 = vpop.f32.mrf.mxu0
    %v887 = vadd.f32 0.0, %v886
    %v888 = vpop.f32.mrf.mxu0
    %v889 = vadd.f32 0.0, %v888
    %v890 = vpop.f32.mrf.mxu0
    %v891 = vpop.f32.mrf.mxu0
    %892 = vdwg.mxu0
    %v893 = vadd.f32 %v127, %v846
    %v894 = vadd.f32 %v129, %v848
    %v895 = vadd.f32 %v168, %v887
    %v896 = vadd.f32 %v170, %v889
    %v897 = vxor.u32 %v893, 2147483648
    %v898 = vmul.f32 %v897, 1.442695
    %v899 = vpow.pop %v898
    %v900 = vadd.f32 %v899, 1.0
    %v901 = vrcp.pop %v900
    %v902 = vmul.f32 1.0, %v901
    %v903 = vxor.u32 %v894, 2147483648
    %v904 = vmul.f32 %v903, 1.442695
    %v905 = vpow.pop %v904
    %v906 = vadd.f32 %v905, 1.0
    %v907 = vrcp.pop %v906
    %v908 = vmul.f32 1.0, %v907
    %v909 = vtanh.pop %v895
    %v910 = vxor.u32 %v896, 2147483648
    %v911 = vmul.f32 %v910, 1.442695
    %v912 = vpow.pop %v911
    %v913 = vadd.f32 %v912, 1.0
    %v914 = vrcp.pop %v913
    %v915 = vmul.f32 1.0, %v914
    %v916 = vmul.f32 %v908, %v807
    %v917 = vmul.f32 %v902, %v909
    %v918 = vadd.f32 %v916, %v917
    %v919 = vtanh.pop %v918
    %v920 = vmul.f32 %v915, %v919
    %v921 = vpack.c.bf16 %v920, %v920
    %922 = vmatprep.subr.bf16.mxu0 %v332
    %923 = vmatpush1.bf16.msra.mxu0 %v331
    %924 = vmatprep.subr.bf16.mxu0 %v328
    %925 = vmatpush1.bf16.msra.mxu0 %v327
    %926 = vmatprep.subr.bf16.mxu0 %v324
    %927 = vmatpush1.bf16.msra.mxu0 %v323
    %928 = vmatprep.subr.bf16.mxu0 %v320
    %929 = vmatpush1.bf16.msra.mxu0 %v319
    %930 = vmatprep.subr.bf16.mxu0 %v316
    %931 = vmatpush1.bf16.msra.mxu0 %v315
    %932 = vmatprep.subr.bf16.mxu0 %v312
    %933 = vmatpush1.bf16.msra.mxu0 %v311
    %934 = vmatprep.subr.bf16.mxu0 %v308
    %935 = vmatpush1.bf16.msra.mxu0 %v307
    %936 = vmatprep.subr.bf16.mxu0 %v304
    %937 = vmatpush1.bf16.msra.mxu0 %v303
    %938 = vmatprep.subr.bf16.mxu0 0
    %939 = vmatpush2.bf16.msra.mxu0 0
    %940 = vmatprep.subr.bf16.mxu0 0
    %941 = vmatpush2.bf16.msra.mxu0 0
    %942 = vmatprep.subr.bf16.mxu0 0
    %943 = vmatpush2.bf16.msra.mxu0 0
    %944 = vmatprep.subr.bf16.mxu0 0
    %945 = vmatpush2.bf16.msra.mxu0 0
    %946 = vmatprep.subr.bf16.mxu0 0
    %947 = vmatpush2.bf16.msra.mxu0 0
    %948 = vmatprep.subr.bf16.mxu0 0
    %949 = vmatpush2.bf16.msra.mxu0 0
    %950 = vmatprep.subr.bf16.mxu0 0
    %951 = vmatpush2.bf16.msra.mxu0 0
    %952 = vmatprep.subr.bf16.mxu0 0
    %953 = vmatpush2.bf16.msra.mxu0 0
    %954 = vmatprep.mubr.bf16.mxu0 0
    %955 = vmatmul.mubr.bf16.gmra.mxu0 %v921
    %v956 = vpop.f32.mrf.mxu0
    %v957 = vadd.f32 0.0, %v956
    %v958 = vpop.f32.mrf.mxu0
    %v959 = vadd.f32 0.0, %v958
    %v960 = vpop.f32.mrf.mxu0
    %v961 = vpop.f32.mrf.mxu0
    %962 = vdwg.mxu0
    %963 = vmatprep.subr.bf16.mxu0 %v334
    %964 = vmatpush1.bf16.msra.mxu0 %v333
    %965 = vmatprep.subr.bf16.mxu0 %v330
    %966 = vmatpush1.bf16.msra.mxu0 %v329
    %967 = vmatprep.subr.bf16.mxu0 %v326
    %968 = vmatpush1.bf16.msra.mxu0 %v325
    %969 = vmatprep.subr.bf16.mxu0 %v322
    %970 = vmatpush1.bf16.msra.mxu0 %v321
    %971 = vmatprep.subr.bf16.mxu0 %v318
    %972 = vmatpush1.bf16.msra.mxu0 %v317
    %973 = vmatprep.subr.bf16.mxu0 %v314
    %974 = vmatpush1.bf16.msra.mxu0 %v313
    %975 = vmatprep.subr.bf16.mxu0 %v310
    %976 = vmatpush1.bf16.msra.mxu0 %v309
    %977 = vmatprep.subr.bf16.mxu0 %v306
    %978 = vmatpush1.bf16.msra.mxu0 %v305
    %979 = vmatprep.subr.bf16.mxu0 0
    %980 = vmatpush2.bf16.msra.mxu0 0
    %981 = vmatprep.subr.bf16.mxu0 0
    %982 = vmatpush2.bf16.msra.mxu0 0
    %983 = vmatprep.subr.bf16.mxu0 0
    %984 = vmatpush2.bf16.msra.mxu0 0
    %985 = vmatprep.subr.bf16.mxu0 0
    %986 = vmatpush2.bf16.msra.mxu0 0
    %987 = vmatprep.subr.bf16.mxu0 0
    %988 = vmatpush2.bf16.msra.mxu0 0
    %989 = vmatprep.subr.bf16.mxu0 0
    %990 = vmatpush2.bf16.msra.mxu0 0
    %991 = vmatprep.subr.bf16.mxu0 0
    %992 = vmatpush2.bf16.msra.mxu0 0
    %993 = vmatprep.subr.bf16.mxu0 0
    %994 = vmatpush2.bf16.msra.mxu0 0
    %995 = vmatprep.mubr.bf16.mxu0 0
    %996 = vmatmul.mubr.bf16.gmra.mxu0 %v921
    %v997 = vpop.f32.mrf.mxu0
    %v998 = vadd.f32 0.0, %v997
    %v999 = vpop.f32.mrf.mxu0
    %v1000 = vadd.f32 0.0, %v999
    %v1001 = vpop.f32.mrf.mxu0
    %v1002 = vpop.f32.mrf.mxu0
    %1003 = vdwg.mxu0
    %v1004 = vadd.f32 %v127, %v957
    %v1005 = vadd.f32 %v129, %v959
    %v1006 = vadd.f32 %v168, %v998
    %v1007 = vadd.f32 %v170, %v1000
    %v1008 = vxor.u32 %v1004, 2147483648
    %v1009 = vmul.f32 %v1008, 1.442695
    %v1010 = vpow.pop %v1009
    %v1011 = vadd.f32 %v1010, 1.0
    %v1012 = vrcp.pop %v1011
    %v1013 = vmul.f32 1.0, %v1012
    %v1014 = vxor.u32 %v1005, 2147483648
    %v1015 = vmul.f32 %v1014, 1.442695
    %v1016 = vpow.pop %v1015
    %v1017 = vadd.f32 %v1016, 1.0
    %v1018 = vrcp.pop %v1017
    %v1019 = vmul.f32 1.0, %v1018
    %v1020 = vtanh.pop %v1006
    %v1021 = vxor.u32 %v1007, 2147483648
    %v1022 = vmul.f32 %v1021, 1.442695
    %v1023 = vpow.pop %v1022
    %v1024 = vadd.f32 %v1023, 1.0
    %v1025 = vrcp.pop %v1024
    %v1026 = vmul.f32 1.0, %v1025
    %v1027 = vmul.f32 %v1019, %v918
    %v1028 = vmul.f32 %v1013, %v1020
    %v1029 = vadd.f32 %v1027, %v1028
    %v1030 = vtanh.pop %v1029
    %v1031 = vmul.f32 %v1026, %v1030
    %v1032 = vpack.c.bf16 %v1031, %v1031
    %1033 = vmatprep.subr.bf16.mxu0 %v332
    %1034 = vmatpush1.bf16.msra.mxu0 %v331
    %1035 = vmatprep.subr.bf16.mxu0 %v328
    %1036 = vmatpush1.bf16.msra.mxu0 %v327
    %1037 = vmatprep.subr.bf16.mxu0 %v324
    %1038 = vmatpush1.bf16.msra.mxu0 %v323
    %1039 = vmatprep.subr.bf16.mxu0 %v320
    %1040 = vmatpush1.bf16.msra.mxu0 %v319
    %1041 = vmatprep.subr.bf16.mxu0 %v316
    %1042 = vmatpush1.bf16.msra.mxu0 %v315
    %1043 = vmatprep.subr.bf16.mxu0 %v312
    %1044 = vmatpush1.bf16.msra.mxu0 %v311
    %1045 = vmatprep.subr.bf16.mxu0 %v308
    %1046 = vmatpush1.bf16.msra.mxu0 %v307
    %1047 = vmatprep.subr.bf16.mxu0 %v304
    %1048 = vmatpush1.bf16.msra.mxu0 %v303
    %1049 = vmatprep.subr.bf16.mxu0 0
    %1050 = vmatpush2.bf16.msra.mxu0 0
    %1051 = vmatprep.subr.bf16.mxu0 0
    %1052 = vmatpush2.bf16.msra.mxu0 0
    %1053 = vmatprep.subr.bf16.mxu0 0
    %1054 = vmatpush2.bf16.msra.mxu0 0
    %1055 = vmatprep.subr.bf16.mxu0 0
    %1056 = vmatpush2.bf16.msra.mxu0 0
    %1057 = vmatprep.subr.bf16.mxu0 0
    %1058 = vmatpush2.bf16.msra.mxu0 0
    %1059 = vmatprep.subr.bf16.mxu0 0
    %1060 = vmatpush2.bf16.msra.mxu0 0
    %1061 = vmatprep.subr.bf16.mxu0 0
    %1062 = vmatpush2.bf16.msra.mxu0 0
    %1063 = vmatprep.subr.bf16.mxu0 0
    %1064 = vmatpush2.bf16.msra.mxu0 0
    %1065 = vmatprep.mubr.bf16.mxu0 0
    %1066 = vmatmul.mubr.bf16.gmra.mxu0 %v1032
    %v1067 = vpop.f32.mrf.mxu0
    %v1068 = vadd.f32 0.0, %v1067
    %v1069 = vpop.f32.mrf.mxu0
    %v1070 = vadd.f32 0.0, %v1069
    %v1071 = vpop.f32.mrf.mxu0
    %v1072 = vpop.f32.mrf.mxu0
    %1073 = vdwg.mxu0
    %1074 = vmatprep.subr.bf16.mxu0 %v334
    %1075 = vmatpush1.bf16.msra.mxu0 %v333
    %1076 = vmatprep.subr.bf16.mxu0 %v330
    %1077 = vmatpush1.bf16.msra.mxu0 %v329
    %1078 = vmatprep.subr.bf16.mxu0 %v326
    %1079 = vmatpush1.bf16.msra.mxu0 %v325
    %1080 = vmatprep.subr.bf16.mxu0 %v322
    %1081 = vmatpush1.bf16.msra.mxu0 %v321
    %1082 = vmatprep.subr.bf16.mxu0 %v318
    %1083 = vmatpush1.bf16.msra.mxu0 %v317
    %1084 = vmatprep.subr.bf16.mxu0 %v314
    %1085 = vmatpush1.bf16.msra.mxu0 %v313
    %1086 = vmatprep.subr.bf16.mxu0 %v310
    %1087 = vmatpush1.bf16.msra.mxu0 %v309
    %1088 = vmatprep.subr.bf16.mxu0 %v306
    %1089 = vmatpush1.bf16.msra.mxu0 %v305
    %1090 = vmatprep.subr.bf16.mxu0 0
    %1091 = vmatpush2.bf16.msra.mxu0 0
    %1092 = vmatprep.subr.bf16.mxu0 0
    %1093 = vmatpush2.bf16.msra.mxu0 0
    %1094 = vmatprep.subr.bf16.mxu0 0
    %1095 = vmatpush2.bf16.msra.mxu0 0
    %1096 = vmatprep.subr.bf16.mxu0 0
    %1097 = vmatpush2.bf16.msra.mxu0 0
    %1098 = vmatprep.subr.bf16.mxu0 0
    %1099 = vmatpush2.bf16.msra.mxu0 0
    %1100 = vmatprep.subr.bf16.mxu0 0
    %1101 = vmatpush2.bf16.msra.mxu0 0
    %1102 = vmatprep.subr.bf16.mxu0 0
    %1103 = vmatpush2.bf16.msra.mxu0 0
    %1104 = vmatprep.subr.bf16.mxu0 0
    %1105 = vmatpush2.bf16.msra.mxu0 0
    %1106 = vmatprep.mubr.bf16.mxu0 0
    %1107 = vmatmul.mubr.bf16.gmra.mxu0 %v1032
    %v1108 = vpop.f32.mrf.mxu0
    %v1109 = vadd.f32 0.0, %v1108
    %v1110 = vpop.f32.mrf.mxu0
    %v1111 = vadd.f32 0.0, %v1110
    %v1112 = vpop.f32.mrf.mxu0
    %v1113 = vpop.f32.mrf.mxu0
    %1114 = vdwg.mxu0
    %v1115 = vadd.f32 %v127, %v1068
    %v1116 = vadd.f32 %v129, %v1070
    %v1117 = vadd.f32 %v168, %v1109
    %v1118 = vadd.f32 %v170, %v1111
    %v1119 = vxor.u32 %v1115, 2147483648
    %v1120 = vmul.f32 %v1119, 1.442695
    %v1121 = vpow.pop %v1120
    %v1122 = vadd.f32 %v1121, 1.0
    %v1123 = vrcp.pop %v1122
    %v1124 = vmul.f32 1.0, %v1123
    %v1125 = vxor.u32 %v1116, 2147483648
    %v1126 = vmul.f32 %v1125, 1.442695
    %v1127 = vpow.pop %v1126
    %v1128 = vadd.f32 %v1127, 1.0
    %v1129 = vrcp.pop %v1128
    %v1130 = vmul.f32 1.0, %v1129
    %v1131 = vtanh.pop %v1117
    %v1132 = vxor.u32 %v1118, 2147483648
    %v1133 = vmul.f32 %v1132, 1.442695
    %v1134 = vpow.pop %v1133
    %v1135 = vadd.f32 %v1134, 1.0
    %v1136 = vrcp.pop %v1135
    %v1137 = vmul.f32 1.0, %v1136
    %v1138 = vmul.f32 %v1130, %v1029
    %v1139 = vmul.f32 %v1124, %v1131
    %v1140 = vadd.f32 %v1138, %v1139
    %v1141 = vtanh.pop %v1140
    %v1142 = vmul.f32 %v1137, %v1141
    %v1143 = vpack.c.bf16 %v1142, %v1142
    %1144 = vmatprep.subr.bf16.mxu0 %v332
    %1145 = vmatpush1.bf16.msra.mxu0 %v331
    %1146 = vmatprep.subr.bf16.mxu0 %v328
    %1147 = vmatpush1.bf16.msra.mxu0 %v327
    %1148 = vmatprep.subr.bf16.mxu0 %v324
    %1149 = vmatpush1.bf16.msra.mxu0 %v323
    %1150 = vmatprep.subr.bf16.mxu0 %v320
    %1151 = vmatpush1.bf16.msra.mxu0 %v319
    %1152 = vmatprep.subr.bf16.mxu0 %v316
    %1153 = vmatpush1.bf16.msra.mxu0 %v315
    %1154 = vmatprep.subr.bf16.mxu0 %v312
    %1155 = vmatpush1.bf16.msra.mxu0 %v311
    %1156 = vmatprep.subr.bf16.mxu0 %v308
    %1157 = vmatpush1.bf16.msra.mxu0 %v307
    %1158 = vmatprep.subr.bf16.mxu0 %v304
    %1159 = vmatpush1.bf16.msra.mxu0 %v303
    %1160 = vmatprep.subr.bf16.mxu0 0
    %1161 = vmatpush2.bf16.msra.mxu0 0
    %1162 = vmatprep.subr.bf16.mxu0 0
    %1163 = vmatpush2.bf16.msra.mxu0 0
    %1164 = vmatprep.subr.bf16.mxu0 0
    %1165 = vmatpush2.bf16.msra.mxu0 0
    %1166 = vmatprep.subr.bf16.mxu0 0
    %1167 = vmatpush2.bf16.msra.mxu0 0
    %1168 = vmatprep.subr.bf16.mxu0 0
    %1169 = vmatpush2.bf16.msra.mxu0 0
    %1170 = vmatprep.subr.bf16.mxu0 0
    %1171 = vmatpush2.bf16.msra.mxu0 0
    %1172 = vmatprep.subr.bf16.mxu0 0
    %1173 = vmatpush2.bf16.msra.mxu0 0
    %1174 = vmatprep.subr.bf16.mxu0 0
    %1175 = vmatpush2.bf16.msra.mxu0 0
    %1176 = vmatprep.mubr.bf16.mxu0 0
    %1177 = vmatmul.mubr.bf16.gmra.mxu0 %v1143
    %v1178 = vpop.f32.mrf.mxu0
    %v1179 = vadd.f32 0.0, %v1178
    %v1180 = vpop.f32.mrf.mxu0
    %v1181 = vadd.f32 0.0, %v1180
    %v1182 = vpop.f32.mrf.mxu0
    %v1183 = vpop.f32.mrf.mxu0
    %1184 = vdwg.mxu0
    %1185 = vmatprep.subr.bf16.mxu0 %v334
    %1186 = vmatpush1.bf16.msra.mxu0 %v333
    %1187 = vmatprep.subr.bf16.mxu0 %v330
    %1188 = vmatpush1.bf16.msra.mxu0 %v329
    %1189 = vmatprep.subr.bf16.mxu0 %v326
    %1190 = vmatpush1.bf16.msra.mxu0 %v325
    %1191 = vmatprep.subr.bf16.mxu0 %v322
    %1192 = vmatpush1.bf16.msra.mxu0 %v321
    %1193 = vmatprep.subr.bf16.mxu0 %v318
    %1194 = vmatpush1.bf16.msra.mxu0 %v317
    %1195 = vmatprep.subr.bf16.mxu0 %v314
    %1196 = vmatpush1.bf16.msra.mxu0 %v313
    %1197 = vmatprep.subr.bf16.mxu0 %v310
    %1198 = vmatpush1.bf16.msra.mxu0 %v309
    %1199 = vmatprep.subr.bf16.mxu0 %v306
    %1200 = vmatpush1.bf16.msra.mxu0 %v305
    %1201 = vmatprep.subr.bf16.mxu0 0
    %1202 = vmatpush2.bf16.msra.mxu0 0
    %1203 = vmatprep.subr.bf16.mxu0 0
    %1204 = vmatpush2.bf16.msra.mxu0 0
    %1205 = vmatprep.subr.bf16.mxu0 0
    %1206 = vmatpush2.bf16.msra.mxu0 0
    %1207 = vmatprep.subr.bf16.mxu0 0
    %1208 = vmatpush2.bf16.msra.mxu0 0
    %1209 = vmatprep.subr.bf16.mxu0 0
    %1210 = vmatpush2.bf16.msra.mxu0 0
    %1211 = vmatprep.subr.bf16.mxu0 0
    %1212 = vmatpush2.bf16.msra.mxu0 0
    %1213 = vmatprep.subr.bf16.mxu0 0
    %1214 = vmatpush2.bf16.msra.mxu0 0
    %1215 = vmatprep.subr.bf16.mxu0 0
    %1216 = vmatpush2.bf16.msra.mxu0 0
    %1217 = vmatprep.mubr.bf16.mxu0 0
    %1218 = vmatmul.mubr.bf16.gmra.mxu0 %v1143
    %v1219 = vpop.f32.mrf.mxu0
    %v1220 = vadd.f32 0.0, %v1219
    %v1221 = vpop.f32.mrf.mxu0
    %v1222 = vadd.f32 0.0, %v1221
    %v1223 = vpop.f32.mrf.mxu0
    %v1224 = vpop.f32.mrf.mxu0
    %1225 = vdwg.mxu0
    %v1226 = vadd.f32 %v127, %v1179
    %v1227 = vadd.f32 %v129, %v1181
    %v1228 = vadd.f32 %v168, %v1220
    %v1229 = vadd.f32 %v170, %v1222
    %v1230 = vxor.u32 %v1226, 2147483648
    %v1231 = vmul.f32 %v1230, 1.442695
    %v1232 = vpow.pop %v1231
    %v1233 = vadd.f32 %v1232, 1.0
    %v1234 = vrcp.pop %v1233
    %v1235 = vmul.f32 1.0, %v1234
    %v1236 = vxor.u32 %v1227, 2147483648
    %v1237 = vmul.f32 %v1236, 1.442695
    %v1238 = vpow.pop %v1237
    %v1239 = vadd.f32 %v1238, 1.0
    %v1240 = vrcp.pop %v1239
    %v1241 = vmul.f32 1.0, %v1240
    %v1242 = vtanh.pop %v1228
    %v1243 = vxor.u32 %v1229, 2147483648
    %v1244 = vmul.f32 %v1243, 1.442695
    %v1245 = vpow.pop %v1244
    %v1246 = vadd.f32 %v1245, 1.0
    %v1247 = vrcp.pop %v1246
    %v1248 = vmul.f32 1.0, %v1247
    %v1249 = vmul.f32 %v1241, %v1140
    %v1250 = vmul.f32 %v1235, %v1242
    %v1251 = vadd.f32 %v1249, %v1250
    %v1252 = vtanh.pop %v1251
    %v1253 = vmul.f32 %v1248, %v1252
    %v1254 = vpack.c.bf16 %v587, %v476
    %v1255 = vpack.c.bf16 %v809, %v698
    %v1256 = vpack.c.bf16 %v1031, %v920
    %v1257 = vpack.c.bf16 %v1253, %v1142
    %v1258 = vld [vmem:[%s4] sm:$0xf]
    %v1259 = vld [vmem:[%s4 + $0x4] sm:$0xf]
    %v1260 = vld [vmem:[%s4 + $0x8] sm:$0xf]
    %v1261 = vld [vmem:[%s4 + $0xc] sm:$0xf]
    %v1262 = vld [vmem:[%s4 + $0x10] sm:$0xf]
    %v1263 = vld [vmem:[%s4 + $0x14] sm:$0xf]
    %v1264 = vld [vmem:[%s4 + $0x18] sm:$0xf]
    %v1265 = vld [vmem:[%s4 + $0x1c] sm:$0xf]
    %v1266 = vld [vmem:[%s4 + $0x20] sm:$0xf]
    %v1267 = vld [vmem:[%s4 + $0x24] sm:$0xf]
    %v1268 = vld [vmem:[%s4 + $0x28] sm:$0xf]
    %v1269 = vld [vmem:[%s4 + $0x2c] sm:$0xf]
    %v1270 = vld [vmem:[%s4 + $0x30] sm:$0xf]
    %v1271 = vld [vmem:[%s4 + $0x34] sm:$0xf]
    %v1272 = vld [vmem:[%s4 + $0x38] sm:$0xf]
    %v1273 = vld [vmem:[%s4 + $0x3c] sm:$0xf]
    %v1275 = vlaneseq
    %v1276 = vshrl.u32 %v1275, 7
    %v1277 = vsub.s32 0, %v1276
    %v1278 = vrot.slane %v174, %v1277
    %v1296 = vunpack.c.l.b16 %v1258
    %v1297 = vunpack.c.l.b16 %v1259
    %v1298 = vunpack.c.l.b16 %v1260
    %v1299 = vunpack.c.l.b16 %v1261
    %v1300 = vunpack.c.l.b16 %v1262
    %v1301 = vunpack.c.l.b16 %v1263
    %v1302 = vunpack.c.l.b16 %v1264
    %v1303 = vunpack.c.l.b16 %v1265
    %v1304 = vunpack.c.l.b16 %v1266
    %v1305 = vunpack.c.l.b16 %v1267
    %v1306 = vunpack.c.l.b16 %v1268
    %v1307 = vunpack.c.l.b16 %v1269
    %v1308 = vunpack.c.l.b16 %v1270
    %v1309 = vunpack.c.l.b16 %v1271
    %v1310 = vunpack.c.l.b16 %v1272
    %v1311 = vunpack.c.l.b16 %v1273
    %v1312 = vpack.c.b16 %v1297, %v1296
    %v1313 = vpack.c.b16 %v1299, %v1298
    %v1314 = vpack.c.b16 %v1301, %v1300
    %v1315 = vpack.c.b16 %v1303, %v1302
    %v1316 = vpack.c.b16 %v1305, %v1304
    %v1317 = vpack.c.b16 %v1307, %v1306
    %v1318 = vpack.c.b16 %v1309, %v1308
    %v1319 = vpack.c.b16 %v1311, %v1310
    %1328 = vmatprep.subr.bf16.mxu0 0
    %1329 = vmatpush1.bf16.msra.mxu0 %v1319
    %1330 = vmatprep.subr.bf16.mxu0 0
    %1331 = vmatpush1.bf16.msra.mxu0 %v1318
    %1332 = vmatprep.subr.bf16.mxu0 0
    %1333 = vmatpush1.bf16.msra.mxu0 %v1317
    %1334 = vmatprep.subr.bf16.mxu0 0
    %1335 = vmatpush1.bf16.msra.mxu0 %v1316
    %1336 = vmatprep.subr.bf16.mxu0 0
    %1337 = vmatpush1.bf16.msra.mxu0 %v1315
    %1338 = vmatprep.subr.bf16.mxu0 0
    %1339 = vmatpush1.bf16.msra.mxu0 %v1314
    %1340 = vmatprep.subr.bf16.mxu0 0
    %1341 = vmatpush1.bf16.msra.mxu0 %v1313
    %1342 = vmatprep.subr.bf16.mxu0 0
    %1343 = vmatpush1.bf16.msra.mxu0 %v1312
    %1344 = vmatprep.subr.bf16.mxu0 0
    %1345 = vmatpush2.bf16.msra.mxu0 0
    %1346 = vmatprep.subr.bf16.mxu0 0
    %1347 = vmatpush2.bf16.msra.mxu0 0
    %1348 = vmatprep.subr.bf16.mxu0 0
    %1349 = vmatpush2.bf16.msra.mxu0 0
    %1350 = vmatprep.subr.bf16.mxu0 0
    %1351 = vmatpush2.bf16.msra.mxu0 0
    %1352 = vmatprep.subr.bf16.mxu0 0
    %1353 = vmatpush2.bf16.msra.mxu0 0
    %1354 = vmatprep.subr.bf16.mxu0 0
    %1355 = vmatpush2.bf16.msra.mxu0 0
    %1356 = vmatprep.subr.bf16.mxu0 0
    %1357 = vmatpush2.bf16.msra.mxu0 0
    %1358 = vmatprep.subr.bf16.mxu0 0
    %1359 = vmatpush2.bf16.msra.mxu0 0
    %1360 = vmatprep.mubr.bf16.mxu0 0
    %1361 = vmatmul.mubr.bf16.gmra.mxu0 %v1254
    %v1362 = vpop.f32.mrf.mxu0
    %v1363 = vadd.f32 %v1278, %v1362
    %v1364 = vpop.f32.mrf.mxu0
    %v1365 = vpop.f32.mrf.mxu0
    %v1366 = vadd.f32 %v1278, %v1365
    %v1367 = vpop.f32.mrf.mxu0
    %1368 = vmatprep.mubr.bf16.mxu0 0
    %1369 = vmatmul.mubr.bf16.gmra.mxu0 %v1255
    %v1370 = vpop.f32.mrf.mxu0
    %v1371 = vadd.f32 %v1278, %v1370
    %v1372 = vpop.f32.mrf.mxu0
    %v1373 = vpop.f32.mrf.mxu0
    %v1374 = vadd.f32 %v1278, %v1373
    %v1375 = vpop.f32.mrf.mxu0
    %1376 = vmatprep.mubr.bf16.mxu0 0
    %1377 = vmatmul.mubr.bf16.gmra.mxu0 %v1256
    %v1378 = vpop.f32.mrf.mxu0
    %v1379 = vadd.f32 %v1278, %v1378
    %v1380 = vpop.f32.mrf.mxu0
    %v1381 = vpop.f32.mrf.mxu0
    %v1382 = vadd.f32 %v1278, %v1381
    %v1383 = vpop.f32.mrf.mxu0
    %1384 = vmatprep.mubr.bf16.mxu0 0
    %1385 = vmatmul.mubr.bf16.gmra.mxu0 %v1257
    %v1386 = vpop.f32.mrf.mxu0
    %v1387 = vadd.f32 %v1278, %v1386
    %v1388 = vpop.f32.mrf.mxu0
    %v1389 = vpop.f32.mrf.mxu0
    %v1390 = vadd.f32 %v1278, %v1389
    %v1391 = vpop.f32.mrf.mxu0
    %1392 = vdwg.mxu0
    %vm1393 = vcmask 64512
    %1394 = vst.msk [vmem:[%s6] sm:$0xff] %vm1393, %v1363
    %1395 = vst.msk [vmem:[%s6 + $0x8] sm:$0xff] %vm1393, %v1366
    %1396 = vst.msk [vmem:[%s6 + $0x10] sm:$0xff] %vm1393, %v1371
    %1397 = vst.msk [vmem:[%s6 + $0x18] sm:$0xff] %vm1393, %v1374
    %1398 = vst.msk [vmem:[%s6 + $0x20] sm:$0xff] %vm1393, %v1379
    %1399 = vst.msk [vmem:[%s6 + $0x28] sm:$0xff] %vm1393, %v1382
    %1400 = vst.msk [vmem:[%s6 + $0x30] sm:$0xff] %vm1393, %v1387
    %1401 = vst.msk [vmem:[%s6 + $0x38] sm:$0xff] %vm1393, %v1390
    %v1402 = vlaneseq
    %v1403 = vand.u32 %v1402, 127
    %v1404 = vsel %vm1393, %v1363, -inf
    %1405 = vmax.xlane.f32.xlu0 %v1404
    %v1406 = vpop.xlane.xlu0 %1405
    %v1407 = vsel %vm1393, %v1366, -inf
    %1408 = vmax.xlane.f32.xlu0 %v1407
    %v1409 = vpop.xlane.xlu0 %1408
    %v1410 = vsel %vm1393, %v1371, -inf
    %1411 = vmax.xlane.f32.xlu0 %v1410
    %v1412 = vpop.xlane.xlu0 %1411
    %v1413 = vsel %vm1393, %v1374, -inf
    %1414 = vmax.xlane.f32.xlu0 %v1413
    %v1415 = vpop.xlane.xlu0 %1414
    %v1416 = vsel %vm1393, %v1379, -inf
    %1417 = vmax.xlane.f32.xlu0 %v1416
    %v1418 = vpop.xlane.xlu0 %1417
    %v1419 = vsel %vm1393, %v1382, -inf
    %1420 = vmax.xlane.f32.xlu0 %v1419
    %v1421 = vpop.xlane.xlu0 %1420
    %v1422 = vsel %vm1393, %v1387, -inf
    %1423 = vmax.xlane.f32.xlu0 %v1422
    %v1424 = vpop.xlane.xlu0 %1423
    %v1425 = vsel %vm1393, %v1390, -inf
    %1426 = vmax.xlane.f32.xlu0 %v1425
    %v1427 = vpop.xlane.xlu0 %1426
    %vm1428 = vcmp.eq.f32.partialorder %v1363, %v1406
    %vm1429 = vcmp.eq.f32.partialorder %v1366, %v1409
    %vm1430 = vcmp.eq.f32.partialorder %v1371, %v1412
    %vm1431 = vcmp.eq.f32.partialorder %v1374, %v1415
    %vm1432 = vcmp.eq.f32.partialorder %v1379, %v1418
    %vm1433 = vcmp.eq.f32.partialorder %v1382, %v1421
    %vm1434 = vcmp.eq.f32.partialorder %v1387, %v1424
    %vm1435 = vcmp.eq.f32.partialorder %v1390, %v1427
    %v1436 = vsel %vm1428, %v1403, 8
    %v1437 = vsel %vm1429, %v1403, 8
    %v1438 = vsel %vm1430, %v1403, 8
    %v1439 = vsel %vm1431, %v1403, 8
    %v1440 = vsel %vm1432, %v1403, 8
    %v1441 = vsel %vm1433, %v1403, 8
    %v1442 = vsel %vm1434, %v1403, 8
    %v1443 = vsel %vm1435, %v1403, 8
    %v1444 = vsel %vm1393, %v1436, 2147483647
    %v1445 = vand.u32 %v1444, 65535
    %v1446 = vshra.s32 %v1444, 16
    %v1447 = vcvt.s32.f32 %v1445
    %v1448 = vcvt.s32.f32 %v1446
    %1449 = vmin.xlane.f32.xlu0 %v1448
    %v1450 = vpop.xlane.xlu0 %1449
    %vm1451 = vcmp.eq.f32.partialorder %v1448, %v1450
    %v1452 = vsel %vm1451, %v1447, inf
    %1453 = vmin.xlane.f32.xlu0 %v1452
    %v1454 = vpop.xlane.xlu0 %1453
    %v1455 = vcvt.f32.s32 %v1454
    %v1456 = vcvt.f32.s32 %v1450
    %v1457 = vshll.u32 %v1456, 16
    %v1458 = vadd.s32 %v1457, %v1455
    %v1459 = vsel %vm1393, %v1437, 2147483647
    %v1460 = vand.u32 %v1459, 65535
    %v1461 = vshra.s32 %v1459, 16
    %v1462 = vcvt.s32.f32 %v1460
    %v1463 = vcvt.s32.f32 %v1461
    %1464 = vmin.xlane.f32.xlu0 %v1463
    %v1465 = vpop.xlane.xlu0 %1464
    %vm1466 = vcmp.eq.f32.partialorder %v1463, %v1465
    %v1467 = vsel %vm1466, %v1462, inf
    %1468 = vmin.xlane.f32.xlu0 %v1467
    %v1469 = vpop.xlane.xlu0 %1468
    %v1470 = vcvt.f32.s32 %v1469
    %v1471 = vcvt.f32.s32 %v1465
    %v1472 = vshll.u32 %v1471, 16
    %v1473 = vadd.s32 %v1472, %v1470
    %v1474 = vsel %vm1393, %v1438, 2147483647
    %v1475 = vand.u32 %v1474, 65535
    %v1476 = vshra.s32 %v1474, 16
    %v1477 = vcvt.s32.f32 %v1475
    %v1478 = vcvt.s32.f32 %v1476
    %1479 = vmin.xlane.f32.xlu0 %v1478
    %v1480 = vpop.xlane.xlu0 %1479
    %vm1481 = vcmp.eq.f32.partialorder %v1478, %v1480
    %v1482 = vsel %vm1481, %v1477, inf
    %1483 = vmin.xlane.f32.xlu0 %v1482
    %v1484 = vpop.xlane.xlu0 %1483
    %v1485 = vcvt.f32.s32 %v1484
    %v1486 = vcvt.f32.s32 %v1480
    %v1487 = vshll.u32 %v1486, 16
    %v1488 = vadd.s32 %v1487, %v1485
    %v1489 = vsel %vm1393, %v1439, 2147483647
    %v1490 = vand.u32 %v1489, 65535
    %v1491 = vshra.s32 %v1489, 16
    %v1492 = vcvt.s32.f32 %v1490
    %v1493 = vcvt.s32.f32 %v1491
    %1494 = vmin.xlane.f32.xlu0 %v1493
    %v1495 = vpop.xlane.xlu0 %1494
    %vm1496 = vcmp.eq.f32.partialorder %v1493, %v1495
    %v1497 = vsel %vm1496, %v1492, inf
    %1498 = vmin.xlane.f32.xlu0 %v1497
    %v1499 = vpop.xlane.xlu0 %1498
    %v1500 = vcvt.f32.s32 %v1499
    %v1501 = vcvt.f32.s32 %v1495
    %v1502 = vshll.u32 %v1501, 16
    %v1503 = vadd.s32 %v1502, %v1500
    %v1504 = vsel %vm1393, %v1440, 2147483647
    %v1505 = vand.u32 %v1504, 65535
    %v1506 = vshra.s32 %v1504, 16
    %v1507 = vcvt.s32.f32 %v1505
    %v1508 = vcvt.s32.f32 %v1506
    %1509 = vmin.xlane.f32.xlu0 %v1508
    %v1510 = vpop.xlane.xlu0 %1509
    %vm1511 = vcmp.eq.f32.partialorder %v1508, %v1510
    %v1512 = vsel %vm1511, %v1507, inf
    %1513 = vmin.xlane.f32.xlu0 %v1512
    %v1514 = vpop.xlane.xlu0 %1513
    %v1515 = vcvt.f32.s32 %v1514
    %v1516 = vcvt.f32.s32 %v1510
    %v1517 = vshll.u32 %v1516, 16
    %v1518 = vadd.s32 %v1517, %v1515
    %v1519 = vsel %vm1393, %v1441, 2147483647
    %v1520 = vand.u32 %v1519, 65535
    %v1521 = vshra.s32 %v1519, 16
    %v1522 = vcvt.s32.f32 %v1520
    %v1523 = vcvt.s32.f32 %v1521
    %1524 = vmin.xlane.f32.xlu0 %v1523
    %v1525 = vpop.xlane.xlu0 %1524
    %vm1526 = vcmp.eq.f32.partialorder %v1523, %v1525
    %v1527 = vsel %vm1526, %v1522, inf
    %1528 = vmin.xlane.f32.xlu0 %v1527
    %v1529 = vpop.xlane.xlu0 %1528
    %v1530 = vcvt.f32.s32 %v1529
    %v1531 = vcvt.f32.s32 %v1525
    %v1532 = vshll.u32 %v1531, 16
    %v1533 = vadd.s32 %v1532, %v1530
    %v1534 = vsel %vm1393, %v1442, 2147483647
    %v1535 = vand.u32 %v1534, 65535
    %v1536 = vshra.s32 %v1534, 16
    %v1537 = vcvt.s32.f32 %v1535
    %v1538 = vcvt.s32.f32 %v1536
    %1539 = vmin.xlane.f32.xlu0 %v1538
    %v1540 = vpop.xlane.xlu0 %1539
    %vm1541 = vcmp.eq.f32.partialorder %v1538, %v1540
    %v1542 = vsel %vm1541, %v1537, inf
    %1543 = vmin.xlane.f32.xlu0 %v1542
    %v1544 = vpop.xlane.xlu0 %1543
    %v1545 = vcvt.f32.s32 %v1544
    %v1546 = vcvt.f32.s32 %v1540
    %v1547 = vshll.u32 %v1546, 16
    %v1548 = vadd.s32 %v1547, %v1545
    %v1549 = vsel %vm1393, %v1443, 2147483647
    %v1550 = vand.u32 %v1549, 65535
    %v1551 = vshra.s32 %v1549, 16
    %v1552 = vcvt.s32.f32 %v1550
    %v1553 = vcvt.s32.f32 %v1551
    %1554 = vmin.xlane.f32.xlu0 %v1553
    %v1555 = vpop.xlane.xlu0 %1554
    %vm1556 = vcmp.eq.f32.partialorder %v1553, %v1555
    %v1557 = vsel %vm1556, %v1552, inf
    %1558 = vmin.xlane.f32.xlu0 %v1557
    %v1559 = vpop.xlane.xlu0 %1558
    %v1560 = vcvt.f32.s32 %v1559
    %v1561 = vcvt.f32.s32 %v1555
    %v1562 = vshll.u32 %v1561, 16
    %v1563 = vadd.s32 %v1562, %v1560
    %vm1564 = vcmp.eq.s32.totalorder %v1403, %v1458
    %vm1565 = vcmp.eq.s32.totalorder %v1403, %v1473
    %vm1566 = vcmp.eq.s32.totalorder %v1403, %v1488
    %vm1567 = vcmp.eq.s32.totalorder %v1403, %v1503
    %vm1568 = vcmp.eq.s32.totalorder %v1403, %v1518
    %vm1569 = vcmp.eq.s32.totalorder %v1403, %v1533
    %vm1570 = vcmp.eq.s32.totalorder %v1403, %v1548
    %vm1571 = vcmp.eq.s32.totalorder %v1403, %v1563
    %v1572 = vsel %vm1564, 1, 0
    %v1573 = vsel %vm1565, 1, 0
    %v1574 = vsel %vm1566, 1, 0
    %v1575 = vsel %vm1567, 1, 0
    %v1576 = vsel %vm1568, 1, 0
    %v1577 = vsel %vm1569, 1, 0
    %v1578 = vsel %vm1570, 1, 0
    %v1579 = vsel %vm1571, 1, 0
    %v1580 = vcvt.s32.f32 %v1572
    %v1581 = vcvt.s32.f32 %v1573
    %v1582 = vcvt.s32.f32 %v1574
    %v1583 = vcvt.s32.f32 %v1575
    %v1584 = vcvt.s32.f32 %v1576
    %v1585 = vcvt.s32.f32 %v1577
    %v1586 = vcvt.s32.f32 %v1578
    %v1587 = vcvt.s32.f32 %v1579
    %1588 = vst.msk [vmem:[%s7] sm:$0xff] %vm1393, %v1580
    %1589 = vst.msk [vmem:[%s7 + $0x8] sm:$0xff] %vm1393, %v1581
    %1590 = vst.msk [vmem:[%s7 + $0x10] sm:$0xff] %vm1393, %v1582
    %1591 = vst.msk [vmem:[%s7 + $0x18] sm:$0xff] %vm1393, %v1583
    %1592 = vst.msk [vmem:[%s7 + $0x20] sm:$0xff] %vm1393, %v1584
    %1593 = vst.msk [vmem:[%s7 + $0x28] sm:$0xff] %vm1393, %v1585
    %1594 = vst.msk [vmem:[%s7 + $0x30] sm:$0xff] %vm1393, %v1586
    %1595 = vst.msk [vmem:[%s7 + $0x38] sm:$0xff] %vm1393, %v1587
    // Predicated region
    $region30: #{tpu_custom_call.1} parent=1 // pred_check
      _
    $region31: #{tpu_custom_call.1} parent=1 // pred_check_branch
      %1597 = sbr.rel (0) target = $region33
    $region32: #{tpu_custom_call.1} parent=1 // pred_region
      _
    $region33: #{tpu_custom_call.1} parent=1 // pred_fallthru
      _
    // Predicated region
    $region34: #{tpu_custom_call.1} parent=1 // pred_check
      _
    $region35: #{tpu_custom_call.1} parent=1 // pred_check_branch
      %1599 = sbr.rel (0) target = $region37
    $region36: #{tpu_custom_call.1} parent=1 // pred_region
      _
    $region37: #{tpu_custom_call.1} parent=1 // pred_fallthru
      _
    // Predicated region
    $region38: #{tpu_custom_call.1} parent=1 // pred_check
      _
    $region39: #{tpu_custom_call.1} parent=1 // pred_check_branch
      %1601 = sbr.rel (0) target = $region41
    $region40: #{tpu_custom_call.1} parent=1 // pred_region
      _
    $region41: #{tpu_custom_call.1} parent=1 // pred_fallthru
      _
    // Predicated region
    $region42: #{tpu_custom_call.1} parent=1 // pred_check
      _
    $region43: #{tpu_custom_call.1} parent=1 // pred_check_branch
      %1603 = sbr.rel (0) target = $region45
    $region44: #{tpu_custom_call.1} parent=1 // pred_region
      _
    $region45: #{tpu_custom_call.1} parent=1 // pred_fallthru
      _
    %1604 = vsyncpa [#allocation3], 1

</llo_original>
